<compile_context>
chip_gen: v7x
topology: tpu7x:2x2x1
jax: 0.10.0
libtpu: 0.0.40
codegen_flags: <defaults>
</compile_context>

<pallas_src>
import functools

import numpy as np
import jax
import jax.numpy as jnp
from jax.experimental import pallas as pl
from jax.experimental.pallas import tpu as pltpu


_NC = 2        # leading "parallel" grid stripes (megacore on 2-TC chips)
_TB_CAP = 32   # max image-pairs per grid step


def _amp_loss_kernel(x_ref, y_ref, bf_ref, a2_ref, out_ref, fold_ref, acc_ref,
                     *, tb, h, wfp):
    """One grid step: tb x-images + tb y-images -> accumulate sum |x_mag - y_mag|."""
    g = pl.program_id(1)
    half = tb * wfp          # lane width of the x (or y) magnitude block
    nbw = 2 * half           # lane width of one folded plane (Re or Im)

    @pl.when(g == 0)
    def _():
        acc_ref[...] = jnp.zeros_like(acc_ref)

    # ---- stage 1: column rFFT (contraction over W); x and y share the pushed RHS ----
    tx = jnp.dot(x_ref[...], bf_ref[...], preferred_element_type=jnp.float32)  # (tb*h, 2*wfp)
    ty = jnp.dot(y_ref[...], bf_ref[...], preferred_element_type=jnp.float32)  # (tb*h, 2*wfp)

    # ---- fold the batch onto the lane axis: (nb*h, wfp) -> (h, nb*wfp) ----
    # Each 8-aligned sublane slab is written exactly once at a 128-aligned lane offset
    # of the persistent VMEM scratch: fold = [Tr | Ti], x images first then y images.
    fdt = fold_ref.dtype
    for b in range(tb):
        r0, r1 = b * h, (b + 1) * h
        # real parts -> lanes [0, nbw)
        fold_ref[:, b * wfp:(b + 1) * wfp] = tx[r0:r1, :wfp].astype(fdt)
        fold_ref[:, half + b * wfp:half + (b + 1) * wfp] = ty[r0:r1, :wfp].astype(fdt)
        # imaginary parts -> lanes [nbw, 2*nbw)
        fold_ref[:, nbw + b * wfp:nbw + (b + 1) * wfp] = tx[r0:r1, wfp:].astype(fdt)
        fold_ref[:, nbw + half + b * wfp:nbw + half + (b + 1) * wfp] = ty[r0:r1, wfp:].astype(fdt)

    # ---- stage 2: row FFT (contraction over H), one MXU launch ----
    # a2 = [Ar; Ai] (2h, h);  uv = [[Ar@Tr | Ar@Ti], [Ai@Tr | Ai@Ti]]
    uv = jnp.dot(a2_ref[...], fold_ref[...], preferred_element_type=jnp.float32)  # (2h, 2*nbw)
    re = uv[:h, :nbw] - uv[h:, nbw:]      # Ar@Tr - Ai@Ti
    im = uv[h:, :nbw] + uv[:h, nbw:]      # Ai@Tr + Ar@Ti
    mag = jnp.sqrt(re * re + im * im)     # (h, nbw): lanes [0,half)=x mags, [half,nbw)=y mags

    acc_ref[...] += jnp.abs(mag[:, :half] - mag[:, half:])

    @pl.when(g == pl.num_programs(1) - 1)
    def _():
        # lane-dense (1, 8, 128) store; wrapper reads element [0, 0].
        out_ref[...] = jnp.full(out_ref.shape, jnp.sum(acc_ref[...]), dtype=out_ref.dtype)


@functools.lru_cache(maxsize=None)
def _dft_constants(H, W):
    """Real-DFT matrices (float32 numpy, cached per (H, W))."""
    Wf = W // 2 + 1
    Wfp = ((Wf + 127) // 128) * 128

    # Column rFFT matrix, zero-padded to Wfp lanes:  [cos | -sin]  -> (W, 2*Wfp)
    n = np.arange(W, dtype=np.float64)[:, None]
    f = np.arange(Wf, dtype=np.float64)[None, :]
    ang_w = 2.0 * np.pi * n * f / W
    bfused = np.zeros((W, 2 * Wfp), np.float32)
    bfused[:, :Wf] = np.cos(ang_w)
    bfused[:, Wfp:Wfp + Wf] = -np.sin(ang_w)

    # Row FFT matrix stacked as A2 = [Ar; Ai] with Ar = cos, Ai = -sin  -> (2H, H)
    k = np.arange(H, dtype=np.float64)[:, None]
    m = np.arange(H, dtype=np.float64)[None, :]
    ang_h = 2.0 * np.pi * k * m / H
    a2 = np.concatenate([np.cos(ang_h), -np.sin(ang_h)], axis=0).astype(np.float32)

    return bfused, a2, Wf, Wfp


@functools.lru_cache(maxsize=1)
def _vmem_policy():
    """Generation-aware (working-set budget, vmem_limit_bytes)."""
    try:
        cap = int(pltpu.get_tpu_info().vmem_capacity_bytes)
    except Exception:
        cap = 64 * 1024 * 1024                       # assume the smallest (v7x-class) part
    if cap >= 96 * 1024 * 1024:                      # v5e / v6e: 128 MiB physical VMEM
        return 56 * 1024 * 1024, 96 * 1024 * 1024
    return 18 * 1024 * 1024, 46 * 1024 * 1024        # v7x-class: 64 MiB physical VMEM


def _choose_tb(BC, H, W, Wfp, op_itemsize, nc, budget):
    """Largest per-step image-pair count whose full VMEM working set fits `budget`."""
    per_pair = (
        2 * 2 * H * W * op_itemsize      # x + y input blocks, double-buffered by the pipeline
        + 2 * H * 2 * Wfp * 4            # tx, ty   (stage-1 f32 matmul outputs)
        + 4 * H * Wfp * op_itemsize      # fold scratch slice [Tr | Ti]
        + 2 * H * 4 * Wfp * 4            # uv       (stage-2 f32 matmul output)
        + 3 * H * 2 * Wfp * 4            # re/im/mag-class elementwise temporaries
        + H * Wfp * 4                    # accumulator slice
    )
    const_bytes = (W * 2 * Wfp + 2 * H * H) * op_itemsize   # single-buffered DFT matrices
    avail = max(budget - const_bytes, per_pair)
    by_budget = max(1, avail // per_pair)
    per_stripe = -(-BC // nc)
    return int(max(1, min(by_budget, per_stripe, _TB_CAP)))


def _const_block_spec(shape):
    """Grid-invariant input spec; single-buffered where the JAX version supports it."""
    idx = lambda c, g: (0, 0)
    try:
        return pl.BlockSpec(shape, idx, pipeline_mode=pl.Buffered(1))
    except (TypeError, AttributeError):
        return pl.BlockSpec(shape, idx)


def _amp_loss_impl(x, y, operand_dtype=jnp.float32):
    B, C, H, W = x.shape
    assert H % 8 == 0, "this kernel assumes H is a multiple of 8"
    BC = B * C

    bfused_np, a2_np, Wf, Wfp = _dft_constants(H, W)
    op_itemsize = np.dtype(operand_dtype).itemsize
    budget, vmem_limit = _vmem_policy()

    nc = min(_NC, BC)
    TB = _choose_tb(BC, H, W, Wfp, op_itemsize, nc, budget)
    if op_itemsize < 4 and (H % 16) and (TB % 2):
        TB += 1                                   # keep TB*H sublane-aligned for packed dtypes
    per_stripe = -(-BC // nc)
    GP = -(-per_stripe // TB)                     # grid steps per parallel stripe
    BCp = nc * GP * TB                            # padded batch (zero images cancel in the L1 sum)

    xr = x.reshape(BC, H, W).astype(operand_dtype)
    yr = y.reshape(BC, H, W).astype(operand_dtype)
    if BCp != BC:
        pad = ((0, BCp - BC), (0, 0), (0, 0))
        xr = jnp.pad(xr, pad)
        yr = jnp.pad(yr, pad)
    x2d = xr.reshape(BCp * H, W)                  # row-stacked images (free reshape)
    y2d = yr.reshape(BCp * H, W)

    bfused = jnp.asarray(bfused_np, dtype=operand_dtype)
    a2 = jnp.asarray(a2_np, dtype=operand_dtype)

    kernel = functools.partial(_amp_loss_kernel, tb=TB, h=H, wfp=Wfp)

    partials = pl.pallas_call(
        kernel,
        out_shape=jax.ShapeDtypeStruct((nc, 8, 128), jnp.float32),
        grid_spec=pltpu.PrefetchScalarGridSpec(
            num_scalar_prefetch=0,
            grid=(nc, GP),
            in_specs=[
                pl.BlockSpec((TB * H, W), lambda c, g: (c * GP + g, 0)),   # x images
                pl.BlockSpec((TB * H, W), lambda c, g: (c * GP + g, 0)),   # y images
                _const_block_spec((W, 2 * Wfp)),                           # column-DFT [cos|-sin]
                _const_block_spec((2 * H, H)),                             # row-DFT [Ar; Ai]
            ],
            out_specs=pl.BlockSpec((1, 8, 128), lambda c, g: (c, 0, 0)),   # per-stripe partial sum
            scratch_shapes=[
                pltpu.VMEM((H, 4 * TB * Wfp), operand_dtype),   # fold scratch [Tr | Ti]
                pltpu.VMEM((H, TB * Wfp), jnp.float32),         # |x_mag - y_mag| accumulator
            ],
        ),
        compiler_params=pltpu.CompilerParams(
            dimension_semantics=("parallel", "arbitrary"),
            vmem_limit_bytes=vmem_limit,
        ),
    )(x2d, y2d, bfused, a2)

    total = jnp.sum(partials[:, 0, 0])
    # L1Loss reduction='mean' over the true (unpadded) magnitude elements.
    return total / jnp.float32(BC * H * Wf)


amp_loss = jax.jit(functools.partial(_amp_loss_impl, operand_dtype=jnp.float32))
# Optional fast path: bf16 operands, f32 MXU accumulation (~3x MXU, half input DMA).
amp_loss_bf16 = jax.jit(functools.partial(_amp_loss_impl, operand_dtype=jnp.bfloat16))


def amp_loss_ref(x, y):
    """Pure-JAX reference matching torch semantics."""
    xm = jnp.abs(jnp.fft.rfft2(x, norm="backward"))
    ym = jnp.abs(jnp.fft.rfft2(y, norm="backward"))
    return jnp.mean(jnp.abs(xm - ym))


if __name__ == "__main__":
    key = jax.random.PRNGKey(0)
    kx, ky = jax.random.split(key)
    B, C, H, W = 2, 4, 16, 16
    x = jax.random.normal(kx, (B, C, H, W), dtype=jnp.float32)
    y = jax.random.normal(ky, (B, C, H, W), dtype=jnp.float32)

    ref = jax.block_until_ready(amp_loss_ref(x, y))

    out = jax.block_until_ready(amp_loss(x, y))
    np.testing.assert_allclose(np.asarray(out), np.asarray(ref), rtol=1e-3, atol=1e-3)

    # bf16-operand fast path: same kernel, looser tolerance for the reduced-precision DFT.
    out_bf16 = jax.block_until_ready(amp_loss_bf16(x, y))
    np.testing.assert_allclose(np.asarray(out_bf16), np.asarray(ref), rtol=5e-2, atol=5e-2)

    print("KERNEL_OK")
</pallas_src>

<mosaic_0001>
module attributes {stable_mosaic.version = 11 : i64} {
  func.func @_amp_loss_kernel(%arg0: i32, %arg1: i32, %arg2: memref<64x16xf32, #tpu.memory_space<vmem>>, %arg3: memref<64x16xf32, #tpu.memory_space<vmem>>, %arg4: memref<16x256xf32, #tpu.memory_space<vmem>>, %arg5: memref<32x16xf32, #tpu.memory_space<vmem>>, %arg6: memref<1x8x128xf32, #tpu.memory_space<vmem>>, %arg7: memref<16x2048xf32, #tpu.memory_space<vmem>>, %arg8: memref<16x512xf32, #tpu.memory_space<vmem>>) attributes {dimension_semantics = [#tpu.dimension_semantics<parallel>, #tpu.dimension_semantics<arbitrary>], iteration_bounds = array<i64: 2, 1>, scalar_prefetch = 0 : i64, scratch_operands = 2 : i64, tpu.core_type = #tpu.core_type<tc>, window_params = [{transform_indices = @transform_0, window_bounds = array<i64: 64, 16>}, {transform_indices = @transform_1, window_bounds = array<i64: 64, 16>}, {pipeline_mode = #tpu.pipeline_mode<synchronous>, transform_indices = @transform_2, window_bounds = array<i64: 16, 256>}, {pipeline_mode = #tpu.pipeline_mode<synchronous>, transform_indices = @transform_3, window_bounds = array<i64: 32, 16>}, {transform_indices = @transform_4, window_bounds = array<i64: 1, 8, 128>}]} {
    %c0_i32 = arith.constant 0 : i32
    %0 = arith.cmpi eq, %arg1, %c0_i32 : i32
    %1 = arith.extui %0 : i1 to i32
    %c0_i32_0 = arith.constant 0 : i32
    %2 = arith.cmpi ne, %1, %c0_i32_0 : i32
    scf.if %2 {
      %cst_37 = arith.constant 0.000000e+00 : f32
      %64 = vector.broadcast %cst_37 : f32 to vector<16x512xf32>
      %c0_38 = arith.constant 0 : index
      %c0_39 = arith.constant 0 : index
      %65 = vector.load %arg8[%c0_38, %c0_39] : memref<16x512xf32, #tpu.memory_space<vmem>>, vector<16x512xf32>
      tpu.vector_store %arg8[%c0_38, %c0_39], %64 {strides = array<i32>} : memref<16x512xf32, #tpu.memory_space<vmem>>, vector<16x512xf32>,
    } else {
    }
    %c0 = arith.constant 0 : index
    %c0_1 = arith.constant 0 : index
    %3 = vector.load %arg2[%c0, %c0_1] : memref<64x16xf32, #tpu.memory_space<vmem>>, vector<64x16xf32>
    %c0_2 = arith.constant 0 : index
    %c0_3 = arith.constant 0 : index
    %4 = vector.load %arg4[%c0_2, %c0_3] : memref<16x256xf32, #tpu.memory_space<vmem>>, vector<16x256xf32>
    %cst = arith.constant dense<0.000000e+00> : vector<64x256xf32>
    %5 = tpu.matmul %3, %4, %cst {dimension_numbers = #tpu.dot_dimension_numbers<[1], [0], [0], [1], [0, 0, 1, 1], [], []>} : vector<64x16xf32>, vector<16x256xf32>, vector<64x256xf32> -> vector<64x256xf32>
    %c0_4 = arith.constant 0 : index
    %c0_5 = arith.constant 0 : index
    %6 = vector.load %arg3[%c0_4, %c0_5] : memref<64x16xf32, #tpu.memory_space<vmem>>, vector<64x16xf32>
    %c0_6 = arith.constant 0 : index
    %c0_7 = arith.constant 0 : index
    %7 = vector.load %arg4[%c0_6, %c0_7] : memref<16x256xf32, #tpu.memory_space<vmem>>, vector<16x256xf32>
    %cst_8 = arith.constant dense<0.000000e+00> : vector<64x256xf32>
    %8 = tpu.matmul %6, %7, %cst_8 {dimension_numbers = #tpu.dot_dimension_numbers<[1], [0], [0], [1], [0, 0, 1, 1], [], []>} : vector<64x16xf32>, vector<16x256xf32>, vector<64x256xf32> -> vector<64x256xf32>
    %9 = vector.extract_strided_slice %5 {offsets = [0, 0], sizes = [16, 128], strides = [1, 1]} : vector<64x256xf32> to vector<16x128xf32>
    %c0_9 = arith.constant 0 : index
    %c0_10 = arith.constant 0 : index
    %10 = vector.load %arg7[%c0_9, %c0_10] : memref<16x2048xf32, #tpu.memory_space<vmem>>, vector<16x128xf32>
    tpu.vector_store %arg7[%c0_9, %c0_10], %9 {strides = array<i32>} : memref<16x2048xf32, #tpu.memory_space<vmem>>, vector<16x128xf32>,
    %11 = vector.extract_strided_slice %8 {offsets = [0, 0], sizes = [16, 128], strides = [1, 1]} : vector<64x256xf32> to vector<16x128xf32>
    %c0_11 = arith.constant 0 : index
    %c512 = arith.constant 512 : index
    %12 = vector.load %arg7[%c0_11, %c512] : memref<16x2048xf32, #tpu.memory_space<vmem>>, vector<16x128xf32>
    tpu.vector_store %arg7[%c0_11, %c512], %11 {strides = array<i32>} : memref<16x2048xf32, #tpu.memory_space<vmem>>, vector<16x128xf32>,
    %13 = vector.extract_strided_slice %5 {offsets = [0, 128], sizes = [16, 128], strides = [1, 1]} : vector<64x256xf32> to vector<16x128xf32>
    %c0_12 = arith.constant 0 : index
    %c1024 = arith.constant 1024 : index
    %14 = vector.load %arg7[%c0_12, %c1024] : memref<16x2048xf32, #tpu.memory_space<vmem>>, vector<16x128xf32>
    tpu.vector_store %arg7[%c0_12, %c1024], %13 {strides = array<i32>} : memref<16x2048xf32, #tpu.memory_space<vmem>>, vector<16x128xf32>,
    %15 = vector.extract_strided_slice %8 {offsets = [0, 128], sizes = [16, 128], strides = [1, 1]} : vector<64x256xf32> to vector<16x128xf32>
    %c0_13 = arith.constant 0 : index
    %c1536 = arith.constant 1536 : index
    %16 = vector.load %arg7[%c0_13, %c1536] : memref<16x2048xf32, #tpu.memory_space<vmem>>, vector<16x128xf32>
    tpu.vector_store %arg7[%c0_13, %c1536], %15 {strides = array<i32>} : memref<16x2048xf32, #tpu.memory_space<vmem>>, vector<16x128xf32>,
    %17 = vector.extract_strided_slice %5 {offsets = [16, 0], sizes = [16, 128], strides = [1, 1]} : vector<64x256xf32> to vector<16x128xf32>
    %c0_14 = arith.constant 0 : index
    %c128 = arith.constant 128 : index
    %18 = vector.load %arg7[%c0_14, %c128] : memref<16x2048xf32, #tpu.memory_space<vmem>>, vector<16x128xf32>
    tpu.vector_store %arg7[%c0_14, %c128], %17 {strides = array<i32>} : memref<16x2048xf32, #tpu.memory_space<vmem>>, vector<16x128xf32>,
    %19 = vector.extract_strided_slice %8 {offsets = [16, 0], sizes = [16, 128], strides = [1, 1]} : vector<64x256xf32> to vector<16x128xf32>
    %c0_15 = arith.constant 0 : index
    %c640 = arith.constant 640 : index
    %20 = vector.load %arg7[%c0_15, %c640] : memref<16x2048xf32, #tpu.memory_space<vmem>>, vector<16x128xf32>
    tpu.vector_store %arg7[%c0_15, %c640], %19 {strides = array<i32>} : memref<16x2048xf32, #tpu.memory_space<vmem>>, vector<16x128xf32>,
    %21 = vector.extract_strided_slice %5 {offsets = [16, 128], sizes = [16, 128], strides = [1, 1]} : vector<64x256xf32> to vector<16x128xf32>
    %c0_16 = arith.constant 0 : index
    %c1152 = arith.constant 1152 : index
    %22 = vector.load %arg7[%c0_16, %c1152] : memref<16x2048xf32, #tpu.memory_space<vmem>>, vector<16x128xf32>
    tpu.vector_store %arg7[%c0_16, %c1152], %21 {strides = array<i32>} : memref<16x2048xf32, #tpu.memory_space<vmem>>, vector<16x128xf32>,
    %23 = vector.extract_strided_slice %8 {offsets = [16, 128], sizes = [16, 128], strides = [1, 1]} : vector<64x256xf32> to vector<16x128xf32>
    %c0_17 = arith.constant 0 : index
    %c1664 = arith.constant 1664 : index
    %24 = vector.load %arg7[%c0_17, %c1664] : memref<16x2048xf32, #tpu.memory_space<vmem>>, vector<16x128xf32>
    tpu.vector_store %arg7[%c0_17, %c1664], %23 {strides = array<i32>} : memref<16x2048xf32, #tpu.memory_space<vmem>>, vector<16x128xf32>,
    %25 = vector.extract_strided_slice %5 {offsets = [32, 0], sizes = [16, 128], strides = [1, 1]} : vector<64x256xf32> to vector<16x128xf32>
    %c0_18 = arith.constant 0 : index
    %c256 = arith.constant 256 : index
    %26 = vector.load %arg7[%c0_18, %c256] : memref<16x2048xf32, #tpu.memory_space<vmem>>, vector<16x128xf32>
    tpu.vector_store %arg7[%c0_18, %c256], %25 {strides = array<i32>} : memref<16x2048xf32, #tpu.memory_space<vmem>>, vector<16x128xf32>,
    %27 = vector.extract_strided_slice %8 {offsets = [32, 0], sizes = [16, 128], strides = [1, 1]} : vector<64x256xf32> to vector<16x128xf32>
    %c0_19 = arith.constant 0 : index
    %c768 = arith.constant 768 : index
    %28 = vector.load %arg7[%c0_19, %c768] : memref<16x2048xf32, #tpu.memory_space<vmem>>, vector<16x128xf32>
    tpu.vector_store %arg7[%c0_19, %c768], %27 {strides = array<i32>} : memref<16x2048xf32, #tpu.memory_space<vmem>>, vector<16x128xf32>,
    %29 = vector.extract_strided_slice %5 {offsets = [32, 128], sizes = [16, 128], strides = [1, 1]} : vector<64x256xf32> to vector<16x128xf32>
    %c0_20 = arith.constant 0 : index
    %c1280 = arith.constant 1280 : index
    %30 = vector.load %arg7[%c0_20, %c1280] : memref<16x2048xf32, #tpu.memory_space<vmem>>, vector<16x128xf32>
    tpu.vector_store %arg7[%c0_20, %c1280], %29 {strides = array<i32>} : memref<16x2048xf32, #tpu.memory_space<vmem>>, vector<16x128xf32>,
    %31 = vector.extract_strided_slice %8 {offsets = [32, 128], sizes = [16, 128], strides = [1, 1]} : vector<64x256xf32> to vector<16x128xf32>
    %c0_21 = arith.constant 0 : index
    %c1792 = arith.constant 1792 : index
    %32 = vector.load %arg7[%c0_21, %c1792] : memref<16x2048xf32, #tpu.memory_space<vmem>>, vector<16x128xf32>
    tpu.vector_store %arg7[%c0_21, %c1792], %31 {strides = array<i32>} : memref<16x2048xf32, #tpu.memory_space<vmem>>, vector<16x128xf32>,
    %33 = vector.extract_strided_slice %5 {offsets = [48, 0], sizes = [16, 128], strides = [1, 1]} : vector<64x256xf32> to vector<16x128xf32>
    %c0_22 = arith.constant 0 : index
    %c384 = arith.constant 384 : index
    %34 = vector.load %arg7[%c0_22, %c384] : memref<16x2048xf32, #tpu.memory_space<vmem>>, vector<16x128xf32>
    tpu.vector_store %arg7[%c0_22, %c384], %33 {strides = array<i32>} : memref<16x2048xf32, #tpu.memory_space<vmem>>, vector<16x128xf32>,
    %35 = vector.extract_strided_slice %8 {offsets = [48, 0], sizes = [16, 128], strides = [1, 1]} : vector<64x256xf32> to vector<16x128xf32>
    %c0_23 = arith.constant 0 : index
    %c896 = arith.constant 896 : index
    %36 = vector.load %arg7[%c0_23, %c896] : memref<16x2048xf32, #tpu.memory_space<vmem>>, vector<16x128xf32>
    tpu.vector_store %arg7[%c0_23, %c896], %35 {strides = array<i32>} : memref<16x2048xf32, #tpu.memory_space<vmem>>, vector<16x128xf32>,
    %37 = vector.extract_strided_slice %5 {offsets = [48, 128], sizes = [16, 128], strides = [1, 1]} : vector<64x256xf32> to vector<16x128xf32>
    %c0_24 = arith.constant 0 : index
    %c1408 = arith.constant 1408 : index
    %38 = vector.load %arg7[%c0_24, %c1408] : memref<16x2048xf32, #tpu.memory_space<vmem>>, vector<16x128xf32>
    tpu.vector_store %arg7[%c0_24, %c1408], %37 {strides = array<i32>} : memref<16x2048xf32, #tpu.memory_space<vmem>>, vector<16x128xf32>,
    %39 = vector.extract_strided_slice %8 {offsets = [48, 128], sizes = [16, 128], strides = [1, 1]} : vector<64x256xf32> to vector<16x128xf32>
    %c0_25 = arith.constant 0 : index
    %c1920 = arith.constant 1920 : index
    %40 = vector.load %arg7[%c0_25, %c1920] : memref<16x2048xf32, #tpu.memory_space<vmem>>, vector<16x128xf32>
    tpu.vector_store %arg7[%c0_25, %c1920], %39 {strides = array<i32>} : memref<16x2048xf32, #tpu.memory_space<vmem>>, vector<16x128xf32>,
    %c0_26 = arith.constant 0 : index
    %c0_27 = arith.constant 0 : index
    %41 = vector.load %arg5[%c0_26, %c0_27] : memref<32x16xf32, #tpu.memory_space<vmem>>, vector<32x16xf32>
    %c0_28 = arith.constant 0 : index
    %c0_29 = arith.constant 0 : index
    %42 = vector.load %arg7[%c0_28, %c0_29] : memref<16x2048xf32, #tpu.memory_space<vmem>>, vector<16x2048xf32>
    %cst_30 = arith.constant dense<0.000000e+00> : vector<32x2048xf32>
    %43 = tpu.matmul %41, %42, %cst_30 {dimension_numbers = #tpu.dot_dimension_numbers<[1], [0], [0], [1], [0, 0, 1, 1], [], []>} : vector<32x16xf32>, vector<16x2048xf32>, vector<32x2048xf32> -> vector<32x2048xf32>
    %44 = vector.extract_strided_slice %43 {offsets = [0, 0], sizes = [16, 1024], strides = [1, 1]} : vector<32x2048xf32> to vector<16x1024xf32>
    %45 = vector.extract_strided_slice %43 {offsets = [16, 1024], sizes = [16, 1024], strides = [1, 1]} : vector<32x2048xf32> to vector<16x1024xf32>
    %46 = arith.subf %44, %45 : vector<16x1024xf32>
    %47 = vector.extract_strided_slice %43 {offsets = [16, 0], sizes = [16, 1024], strides = [1, 1]} : vector<32x2048xf32> to vector<16x1024xf32>
    %48 = vector.extract_strided_slice %43 {offsets = [0, 1024], sizes = [16, 1024], strides = [1, 1]} : vector<32x2048xf32> to vector<16x1024xf32>
    %49 = arith.addf %47, %48 : vector<16x1024xf32>
    %50 = arith.mulf %46, %46 : vector<16x1024xf32>
    %51 = arith.mulf %49, %49 : vector<16x1024xf32>
    %52 = arith.addf %50, %51 : vector<16x1024xf32>
    %53 = math.sqrt %52 : vector<16x1024xf32>
    %c0_31 = arith.constant 0 : index
    %c0_32 = arith.constant 0 : index
    %54 = vector.load %arg8[%c0_31, %c0_32] : memref<16x512xf32, #tpu.memory_space<vmem>>, vector<16x512xf32>
    %55 = vector.extract_strided_slice %53 {offsets = [0, 0], sizes = [16, 512], strides = [1, 1]} : vector<16x1024xf32> to vector<16x512xf32>
    %56 = vector.extract_strided_slice %53 {offsets = [0, 512], sizes = [16, 512], strides = [1, 1]} : vector<16x1024xf32> to vector<16x512xf32>
    %57 = arith.subf %55, %56 : vector<16x512xf32>
    %58 = math.absf %57 : vector<16x512xf32>
    %59 = arith.addf %54, %58 : vector<16x512xf32>
    %c0_33 = arith.constant 0 : index
    %c0_34 = arith.constant 0 : index
    %60 = vector.load %arg8[%c0_33, %c0_34] : memref<16x512xf32, #tpu.memory_space<vmem>>, vector<16x512xf32>
    tpu.vector_store %arg8[%c0_33, %c0_34], %59 {strides = array<i32>} : memref<16x512xf32, #tpu.memory_space<vmem>>, vector<16x512xf32>,
    %c0_i32_35 = arith.constant 0 : i32
    %61 = arith.cmpi eq, %arg1, %c0_i32_35 : i32
    %62 = arith.extui %61 : i1 to i32
    %c0_i32_36 = arith.constant 0 : i32
    %63 = arith.cmpi ne, %62, %c0_i32_36 : i32
    scf.if %63 {
      %c0_37 = arith.constant 0 : index
      %c0_38 = arith.constant 0 : index
      %64 = vector.load %arg8[%c0_37, %c0_38] : memref<16x512xf32, #tpu.memory_space<vmem>>, vector<16x512xf32>
      %65 = vector.shape_cast %64 : vector<16x512xf32> to vector<1x16x512xf32>
      %cst_39 = arith.constant dense<0.000000e+00> : vector<1xf32>
      %66 = vector.multi_reduction <add>, %65, %cst_39 [1, 2] : vector<1x16x512xf32> to vector<1xf32>
      %67 = vector.shape_cast %66 : vector<1xf32> to vector<1x1x1xf32>
      %68 = vector.extract %67[0, 0, 0] : f32 from vector<1x1x1xf32>
      %69 = vector.broadcast %68 : f32 to vector<1x8x128xf32>
      %c0_40 = arith.constant 0 : index
      %c0_41 = arith.constant 0 : index
      %c0_42 = arith.constant 0 : index
      %70 = vector.load %arg6[%c0_40, %c0_41, %c0_42] : memref<1x8x128xf32, #tpu.memory_space<vmem>>, vector<1x8x128xf32>
      tpu.vector_store %arg6[%c0_40, %c0_41, %c0_42], %69 {strides = array<i32>} : memref<1x8x128xf32, #tpu.memory_space<vmem>>, vector<1x8x128xf32>,
    } else {
    }
    return
  }
  func.func @transform_0(%arg0: i32, %arg1: i32) -> (i32, i32) {
    %c1_i32 = arith.constant 1 : i32
    %0 = arith.muli %arg0, %c1_i32 : i32
    %1 = arith.addi %0, %arg1 : i32
    %c0_i32 = arith.constant 0 : i32
    %c0_i32_0 = arith.constant 0 : i32
    return %1, %c0_i32 : i32, i32
  }
  func.func @transform_1(%arg0: i32, %arg1: i32) -> (i32, i32) {
    %c1_i32 = arith.constant 1 : i32
    %0 = arith.muli %arg0, %c1_i32 : i32
    %1 = arith.addi %0, %arg1 : i32
    %c0_i32 = arith.constant 0 : i32
    %c0_i32_0 = arith.constant 0 : i32
    return %1, %c0_i32 : i32, i32
  }
  func.func @transform_2(%arg0: i32, %arg1: i32) -> (i32, i32) {
    %c0_i32 = arith.constant 0 : i32
    %c0_i32_0 = arith.constant 0 : i32
    %c0_i32_1 = arith.constant 0 : i32
    return %c0_i32, %c0_i32_0 : i32, i32
  }
  func.func @transform_3(%arg0: i32, %arg1: i32) -> (i32, i32) {
    %c0_i32 = arith.constant 0 : i32
    %c0_i32_0 = arith.constant 0 : i32
    %c0_i32_1 = arith.constant 0 : i32
    return %c0_i32, %c0_i32_0 : i32, i32
  }
  func.func @transform_4(%arg0: i32, %arg1: i32) -> (i32, i32, i32) {
    %c0_i32 = arith.constant 0 : i32
    %c0_i32_0 = arith.constant 0 : i32
    %c0_i32_1 = arith.constant 0 : i32
    return %arg0, %c0_i32, %c0_i32_0 : i32, i32, i32
  }
}

</mosaic_0001>

<llo_original>
// kernel: _amp_loss_impl.1
$region0: #{_amp_loss_impl.1}
  #allocation0 [shape = 'u32[]', space=smem, size = 0x4, offset = 0x4, fixed_abs, tag = 'smem constant byte address 0x4 - core index']
  #allocation1 [shape = 'u32[144,128]{1,0:T(1,128)}', space=vmem, size = 0x12000, scoped, tag = 'internal scratch']
  #allocation2 [shape = 'f32[16,2048]{1,0:T(8,128)}', space=vmem, size = 0x20000, scoped, tag = 'scratch operand']
  #allocation3 [shape = 'f32[16,512]{1,0:T(8,128)}', space=vmem, size = 0x8000, scoped, tag = 'scratch operand']
  %s0 = inlined_call_operand.hbm [shape: f32[128,16], index: 0, kind: input, shape index: {}]
  %s1 = inlined_call_operand.hbm [shape: f32[128,16], index: 1, kind: input, shape index: {}]
  %s2 = inlined_call_operand.hbm [shape: f32[16,256], index: 2, kind: input, shape index: {}]
  %s3 = inlined_call_operand.hbm [shape: f32[32,16], index: 3, kind: input, shape index: {}]
  %s4 = inlined_call_operand.vmem [shape: f32[2,8,128], index: 4, kind: output, shape index: {}]
  %s5 = sld [smem:[#allocation0]]
  $region73: #{_amp_loss_impl.1} parent=0
    _
  %s7 = ssub.s32 1, %s5
  %s8 = scalar_select 0, %s7, %s5
  $region1: #{_amp_loss_impl.1} parent=0
    #allocation4 [shape = 'u8[65536]{0}', space=vmem, size = 0x10000, scoped, tag = 'input window, operand 0']
    #allocation5 [shape = 's32[2]{0}', space=sflag, size = 0x8, scoped, tag = 'scoped memory for _amp_loss_impl.1']
    #allocation6 [shape = 'u8[65536]{0}', space=vmem, size = 0x10000, scoped, tag = 'input window, operand 1']
    #allocation7 [shape = 's32[2]{0}', space=sflag, size = 0x8, scoped, tag = 'scoped memory for _amp_loss_impl.1']
    #allocation8 [shape = 'u8[16384]{0}', space=vmem, size = 0x4000, scoped, tag = 'input window, operand 2, single buffered']
    #allocation9 [shape = 'u8[16384]{0}', space=vmem, size = 0x4000, scoped, tag = 'input window, operand 3, single buffered']
    #allocation10 [shape = 's32[1]{0}', space=sflag, size = 0x4, scoped, tag = 'scoped memory for _amp_loss_impl.1']
    %9 = vsyncpa [#allocation5], 0
    %s10 = scalar_lea.sflag [#allocation5], 1
    %11 = vsyncpa %s10, 0
    %12 = vsyncpa [#allocation7], 0
    %s13 = scalar_lea.sflag [#allocation7], 1
    %14 = vsyncpa %s13, 0
    %15 = vsyncpa [#allocation10], 0
    loop: start=0, step=1, limit=4
    $region2: #{_amp_loss_impl.1} parent=1 // loop_pre_header
      _
    $region3: #{_amp_loss_impl.1} parent=1 // loop_header
      %s17 = sphi 0, %s21
      %p18 = scmp.ge.s32.totalorder %s17, 4
      %s24 = sphi 0, %s36
      %s25 = sphi 0, %s32
      %s26 = sphi 0, %s24
      %s27 = sphi 0, %s25
      %s28 = sphi 0, %s26
      %s29 = sphi 0, %s27
      %s41 = sphi 0, %s43
      %s44 = sphi 0, %s41
      %s45 = sphi 0, %s44
      %s61 = sphi 0, %s45
      %s69 = sphi 0, %s71
      %s72 = sphi 0, %s69
      %s73 = sphi 0, %s72
      %s89 = sphi 0, %s73
      %s93 = sphi 0, %s93
      %s95 = sphi 0, %s93
      %s96 = sphi 0, %s95
      %s110 = sphi 0, %s96
      %s114 = sphi 0, %s114
      %s116 = sphi 0, %s114
      %s117 = sphi 0, %s116
      %s131 = sphi 0, %s117
      %s137 = sphi 0, %s139
      %s140 = sphi 0, %s137
      %s141 = sphi 0, %s140
      %s157 = sphi 0, %s141
    $region4: #{_amp_loss_impl.1} parent=1 // loop_header_branch
      %20 = sbr.rel (%p18) target = $region8
    $region5: #{_amp_loss_impl.1} parent=1 // loop_body
      %s22 = ssub.s32 %s17, 1
      %s23 = ssub.s32 %s17, 2
      %s30 = sadd.s32 1, %s25
      %p31 = scmp.ge.s32.totalorder %s30, 1
      %s32 = scalar_select %p31, 0, %s30
      %s33 = sadd.s32 1, %s24
      %s34 = scalar_select %p31, %s33, %s24
      %p35 = scmp.ge.s32.totalorder %s34, 2
      %s36 = scalar_select %p35, 0, %s34
      %s37 = sadd.s32 %s24, %s25
      %s38 = sadd.s32 %s36, %s32
      %s39 = ssub.s32 %s37, %s38
      %p40 = scmp.eq.s32.totalorder %s39, 0
      %s42 = sadd.s32 %s41, 1
      %s43 = scalar_select %p40, %s41, %s42
      %p46 = pneg %p40
      %p47 = scmp.eq.s32.totalorder %s17, 1
      %p48 = por %p46, %p47
      %p49 = scmp.ne.s32.totalorder %s41, %s44
      %p50 = scmp.eq.s32.totalorder %s17, 0
      %p51 = por %p49, %p50
      %p52 = scmp.ne.s32.totalorder %s41, %s44
      %p53 = scmp.eq.s32.totalorder %s22, 1
      %p54 = por %p52, %p53
      %p55 = scmp.ne.s32.totalorder %s44, %s45
      %p56 = scmp.eq.s32.totalorder %s22, 0
      %p57 = por %p55, %p56
      %p58 = scmp.ne.s32.totalorder %s44, %s45
      %p59 = scmp.eq.s32.totalorder %s23, 1
      %p60 = por %p58, %p59
      %p62 = scmp.ne.s32.totalorder %s45, %s61
      %p63 = scmp.eq.s32.totalorder %s23, 0
      %p64 = por %p62, %p63
      %s65 = sadd.s32 %s24, %s25
      %s66 = sadd.s32 %s36, %s32
      %s67 = ssub.s32 %s65, %s66
      %p68 = scmp.eq.s32.totalorder %s67, 0
      %s70 = sadd.s32 %s69, 1
      %s71 = scalar_select %p68, %s69, %s70
      %p74 = pneg %p68
      %p75 = scmp.eq.s32.totalorder %s17, 1
      %p76 = por %p74, %p75
      %p77 = scmp.ne.s32.totalorder %s69, %s72
      %p78 = scmp.eq.s32.totalorder %s17, 0
      %p79 = por %p77, %p78
      %p80 = scmp.ne.s32.totalorder %s69, %s72
      %p81 = scmp.eq.s32.totalorder %s22, 1
      %p82 = por %p80, %p81
      %p83 = scmp.ne.s32.totalorder %s72, %s73
      %p84 = scmp.eq.s32.totalorder %s22, 0
      %p85 = por %p83, %p84
      %p86 = scmp.ne.s32.totalorder %s72, %s73
      %p87 = scmp.eq.s32.totalorder %s23, 1
      %p88 = por %p86, %p87
      %p90 = scmp.ne.s32.totalorder %s73, %s89
      %p91 = scmp.eq.s32.totalorder %s23, 0
      %p92 = por %p90, %p91
      %s94 = sadd.s32 %s93, 1
      %p97 = scmp.eq.s32.totalorder %s17, 1
      %p98 = scmp.ne.s32.totalorder %s93, %s95
      %p99 = scmp.eq.s32.totalorder %s17, 0
      %p100 = por %p98, %p99
      %p101 = scmp.ne.s32.totalorder %s93, %s95
      %p102 = scmp.eq.s32.totalorder %s22, 1
      %p103 = por %p101, %p102
      %p104 = scmp.ne.s32.totalorder %s95, %s96
      %p105 = scmp.eq.s32.totalorder %s22, 0
      %p106 = por %p104, %p105
      %p107 = scmp.ne.s32.totalorder %s95, %s96
      %p108 = scmp.eq.s32.totalorder %s23, 1
      %p109 = por %p107, %p108
      %p111 = scmp.ne.s32.totalorder %s96, %s110
      %p112 = scmp.eq.s32.totalorder %s23, 0
      %p113 = por %p111, %p112
      %s115 = sadd.s32 %s114, 1
      %p118 = scmp.eq.s32.totalorder %s17, 1
      %p119 = scmp.ne.s32.totalorder %s114, %s116
      %p120 = scmp.eq.s32.totalorder %s17, 0
      %p121 = por %p119, %p120
      %p122 = scmp.ne.s32.totalorder %s114, %s116
      %p123 = scmp.eq.s32.totalorder %s22, 1
      %p124 = por %p122, %p123
      %p125 = scmp.ne.s32.totalorder %s116, %s117
      %p126 = scmp.eq.s32.totalorder %s22, 0
      %p127 = por %p125, %p126
      %p128 = scmp.ne.s32.totalorder %s116, %s117
      %p129 = scmp.eq.s32.totalorder %s23, 1
      %p130 = por %p128, %p129
      %p132 = scmp.ne.s32.totalorder %s117, %s131
      %p133 = scmp.eq.s32.totalorder %s23, 0
      %p134 = por %p132, %p133
      %s135 = ssub.s32 %s24, %s36
      %p136 = scmp.eq.s32.totalorder %s135, 0
      %s138 = sadd.s32 %s137, 1
      %s139 = scalar_select %p136, %s137, %s138
      %p142 = pneg %p136
      %p143 = scmp.eq.s32.totalorder %s17, 1
      %p144 = por %p142, %p143
      %p145 = scmp.ne.s32.totalorder %s137, %s140
      %p146 = scmp.eq.s32.totalorder %s17, 0
      %p147 = por %p145, %p146
      %p148 = scmp.ne.s32.totalorder %s137, %s140
      %p149 = scmp.eq.s32.totalorder %s22, 1
      %p150 = por %p148, %p149
      %p151 = scmp.ne.s32.totalorder %s140, %s141
      %p152 = scmp.eq.s32.totalorder %s22, 0
      %p153 = por %p151, %p152
      %p154 = scmp.ne.s32.totalorder %s140, %s141
      %p155 = scmp.eq.s32.totalorder %s23, 1
      %p156 = por %p154, %p155
      %p158 = scmp.ne.s32.totalorder %s141, %s157
      %p159 = scmp.eq.s32.totalorder %s23, 0
      %p160 = por %p158, %p159
      %p161 = scmp.le.s32.totalorder 1, %s17
      %p162 = scmp.lt.s32.totalorder %s17, 3
      %p163 = pnand %p161, %p162
      %p164 = pneg %p163
      // Predicated region
      $region9: #{_amp_loss_impl.1} parent=5 // pred_check
        _
      $region10: #{_amp_loss_impl.1} parent=5 // pred_check_branch
        %166 = sbr.rel (%p163) target = $region12
      $region11: #{_amp_loss_impl.1} parent=5 // pred_region
        %s167 = ssub.s32 %s17, 1
        // Predicated region
        $region13: #{_amp_loss_impl.1} parent=11 // pred_check
          %p168 = pneg %p106
        $region14: #{_amp_loss_impl.1} parent=11 // pred_check_branch
          %170 = sbr.rel (%p168) target = $region16
        $region15: #{_amp_loss_impl.1} parent=11 // pred_region
          %s172 = ssub.s32 512, 512
          %173 = vsyncadd [#allocation7], %s172
          %s174 = sshll.u32 [#allocation8], 4
          %s175 = int_to_ptr.vmem [resolvable:$true] %s174
          %180 = dma.hbm_to_vmem [thread:$0]  %s2, 512, %s175, [#allocation7], 256, 256, 16
        $region16: #{_amp_loss_impl.1} parent=11 // pred_fallthru
          _
        // Predicated region
        $region17: #{_amp_loss_impl.1} parent=11 // pred_check
          %p181 = pneg %p127
        $region18: #{_amp_loss_impl.1} parent=11 // pred_check_branch
          %183 = sbr.rel (%p181) target = $region20
        $region19: #{_amp_loss_impl.1} parent=11 // pred_region
          %s185 = ssub.s32 512, 512
          %186 = vsyncadd [#allocation10], %s185
          %s187 = sshll.u32 [#allocation9], 4
          %s188 = int_to_ptr.vmem [resolvable:$true] %s187
          %193 = dma.hbm_to_vmem [thread:$0]  %s3, 512, %s188, [#allocation10], 128, 128, 8
        $region20: #{_amp_loss_impl.1} parent=11 // pred_fallthru
          _
      $region12: #{_amp_loss_impl.1} parent=5 // pred_fallthru
        _
      %p194 = scmp.lt.s32.totalorder %s17, 2
      // Predicated region
      $region21: #{_amp_loss_impl.1} parent=5 // pred_check
        %p195 = pneg %p194
      $region22: #{_amp_loss_impl.1} parent=5 // pred_check_branch
        %197 = sbr.rel (%p195) target = $region24
      $region23: #{_amp_loss_impl.1} parent=5 // pred_region
        // Predicated region
        $region25: #{_amp_loss_impl.1} parent=23 // pred_check
          %p198 = pneg %p51
        $region26: #{_amp_loss_impl.1} parent=23 // pred_check_branch
          %200 = sbr.rel (%p198) target = $region28
        $region27: #{_amp_loss_impl.1} parent=23 // pred_region
          %s201 = sand.u32 %s41, 1
          %s202 = scalar_lea.sflag [#allocation5], %s201
          %s203 = sand.u32 %s41, 1
          %s204 = smul.addr %s203, 64
          %s205 = scalar_lea.vmem [#allocation4], %s204
          %s206 = sadd.s32 %s24, %s25
          %s207 = smul.u32 8, %s206
          %s209 = ssub.s32 1024, 1024
          %210 = vsyncadd %s202, %s209
          %s211 = smul.addr %s207, 128
          %s212 = scalar_lea.hbm %s0, %s211
          %s213 = sshll.u32 %s205, 4
          %s214 = int_to_ptr.vmem [resolvable:$true] %s213
          %219 = dma.hbm_to_vmem [thread:$0]  %s212, 1024, %s214, %s202, 128, 128, 8
        $region28: #{_amp_loss_impl.1} parent=23 // pred_fallthru
          _
        // Predicated region
        $region29: #{_amp_loss_impl.1} parent=23 // pred_check
          %p220 = pneg %p79
        $region30: #{_amp_loss_impl.1} parent=23 // pred_check_branch
          %222 = sbr.rel (%p220) target = $region32
        $region31: #{_amp_loss_impl.1} parent=23 // pred_region
          %s223 = sand.u32 %s17, 1
          %s224 = scalar_lea.sflag [#allocation7], %s223
          %s225 = sand.u32 %s69, 1
          %s226 = smul.addr %s225, 64
          %s227 = scalar_lea.vmem [#allocation6], %s226
          %s228 = sadd.s32 %s24, %s25
          %s229 = smul.u32 8, %s228
          %s231 = ssub.s32 1024, 1024
          %232 = vsyncadd %s224, %s231
          %s233 = smul.addr %s229, 128
          %s234 = scalar_lea.hbm %s1, %s233
          %s235 = sshll.u32 %s227, 4
          %s236 = int_to_ptr.vmem [resolvable:$true] %s235
          %241 = dma.hbm_to_vmem [thread:$0]  %s234, 1024, %s236, %s224, 128, 128, 8
        $region32: #{_amp_loss_impl.1} parent=23 // pred_fallthru
          _
      $region24: #{_amp_loss_impl.1} parent=5 // pred_fallthru
        _
      %p242 = scmp.le.s32.totalorder 1, %s17
      %p243 = scmp.lt.s32.totalorder %s17, 3
      %p244 = pnand %p242, %p243
      %p245 = pneg %p244
      // Predicated region
      $region33: #{_amp_loss_impl.1} parent=5 // pred_check
        _
      $region34: #{_amp_loss_impl.1} parent=5 // pred_check_branch
        %247 = sbr.rel (%p244) target = $region36
      $region35: #{_amp_loss_impl.1} parent=5 // pred_region
        %s248 = ssub.s32 %s17, 1
        %s249 = sand.u32 %s44, 1
        %s250 = scalar_lea.sflag [#allocation5], %s249
        %s251 = sand.u32 %s44, 1
        %s252 = smul.addr %s251, 64
        %s253 = scalar_lea.vmem [#allocation4], %s252
        // Predicated region
        $region37: #{_amp_loss_impl.1} parent=35 // pred_check
          %p254 = pneg %p57
        $region38: #{_amp_loss_impl.1} parent=35 // pred_check_branch
          %256 = sbr.rel (%p254) target = $region40
        $region39: #{_amp_loss_impl.1} parent=35 // pred_region
          %257 = dma.done %s250, 1024
        $region40: #{_amp_loss_impl.1} parent=35 // pred_fallthru
          _
        %s258 = sand.u32 %s22, 1
        %s259 = scalar_lea.sflag [#allocation7], %s258
        %s260 = sand.u32 %s72, 1
        %s261 = smul.addr %s260, 64
        %s262 = scalar_lea.vmem [#allocation6], %s261
        // Predicated region
        $region41: #{_amp_loss_impl.1} parent=35 // pred_check
          %p263 = pneg %p85
        $region42: #{_amp_loss_impl.1} parent=35 // pred_check_branch
          %265 = sbr.rel (%p263) target = $region44
        $region43: #{_amp_loss_impl.1} parent=35 // pred_region
          %266 = dma.done %s259, 1024
        $region44: #{_amp_loss_impl.1} parent=35 // pred_fallthru
          _
        // Predicated region
        $region45: #{_amp_loss_impl.1} parent=35 // pred_check
          %p267 = pneg %p106
        $region46: #{_amp_loss_impl.1} parent=35 // pred_check_branch
          %269 = sbr.rel (%p267) target = $region48
        $region47: #{_amp_loss_impl.1} parent=35 // pred_region
          %270 = dma.done [#allocation7], 512
        $region48: #{_amp_loss_impl.1} parent=35 // pred_fallthru
          _
        // Predicated region
        $region49: #{_amp_loss_impl.1} parent=35 // pred_check
          %p271 = pneg %p127
        $region50: #{_amp_loss_impl.1} parent=35 // pred_check_branch
          %273 = sbr.rel (%p271) target = $region52
        $region51: #{_amp_loss_impl.1} parent=35 // pred_region
          %274 = dma.done [#allocation10], 512
        $region52: #{_amp_loss_impl.1} parent=35 // pred_fallthru
          _
        %s275 = sand.u32 %s44, 1
        %s276 = scalar_lea.sflag [#allocation5], %s275
        %s277 = sand.u32 %s44, 1
        %s278 = smul.addr %s277, 64
        %s279 = scalar_lea.vmem [#allocation4], %s278
        %p280 = pneg %p57
        %p281 = pneg %p54
        %s282 = sand.u32 %s22, 1
        %s283 = scalar_lea.sflag [#allocation7], %s282
        %s284 = sand.u32 %s72, 1
        %s285 = smul.addr %s284, 64
        %s286 = scalar_lea.vmem [#allocation6], %s285
        %p287 = pneg %p85
        %p288 = pneg %p82
        %p289 = pneg %p106
        %p290 = pneg %p103
        %p291 = pneg %p127
        %p292 = pneg %p124
        %p293 = pneg %p153
        %p294 = pneg %p150
        %p295 = scmp.lt.s32.totalorder %s26, 1
        %s296 = scalar_select %p295, %s26, 1
        %s297 = smul.addr %s296, 8
        %s298 = scalar_lea.vmem %s4, %s297
        %s299 = sadd.s32 %s26, %s27
        %s300 = smul.u32 8, %s299
        %s301 = sadd.s32 %s26, %s27
        %s302 = smul.u32 8, %s301
        %p303 = scmp.lt.s32.totalorder %s26, 1
        %s304 = scalar_select %p303, %s26, 1
        %s305 = smul.addr %s304, 8
        %s306 = scalar_lea.vmem %s4, %s305
        %p307 = scmp.eq.s32.totalorder %s27, 0
        // Predicated region
        $region53: #{_amp_loss_impl.1} parent=35 // pred_check
          %p308 = pneg %p307
        $region54: #{_amp_loss_impl.1} parent=35 // pred_check_branch
          %310 = sbr.rel (%p308) target = $region56
        $region55: #{_amp_loss_impl.1} parent=35 // pred_region
          %311 = vst [vmem:[#allocation3] sm:$0xff] 0.0
          %312 = vst [vmem:[#allocation3 + $0x8] sm:$0xff] 0.0
          %313 = vst [vmem:[#allocation3 + $0x10] sm:$0xff] 0.0
          %314 = vst [vmem:[#allocation3 + $0x18] sm:$0xff] 0.0
          %315 = vst [vmem:[#allocation3 + $0x20] sm:$0xff] 0.0
          %316 = vst [vmem:[#allocation3 + $0x28] sm:$0xff] 0.0
          %317 = vst [vmem:[#allocation3 + $0x30] sm:$0xff] 0.0
          %318 = vst [vmem:[#allocation3 + $0x38] sm:$0xff] 0.0
        $region56: #{_amp_loss_impl.1} parent=35 // pred_fallthru
          _
        %v319 = vld [vmem:[%s253] sm:$0xff]
        %v320 = vld [vmem:[%s253 + $0x8] sm:$0xff]
        %v321 = vld [vmem:[%s253 + $0x10] sm:$0xff]
        %v322 = vld [vmem:[%s253 + $0x18] sm:$0xff]
        %v323 = vld [vmem:[%s253 + $0x20] sm:$0xff]
        %v324 = vld [vmem:[%s253 + $0x28] sm:$0xff]
        %v325 = vld [vmem:[%s253 + $0x30] sm:$0xff]
        %v326 = vld [vmem:[%s253 + $0x38] sm:$0xff]
        %v327 = vld [vmem:[#allocation8] sm:$0xff]
        %v328 = vld [vmem:[#allocation8 + $0x8] sm:$0xff]
        %v329 = vld [vmem:[#allocation8 + $0x10] sm:$0xff]
        %v330 = vld [vmem:[#allocation8 + $0x18] sm:$0xff]
        %vm331 = vcmask 130048
        %v333 = vsel %vm331, %v319, 0
        %v336 = vsel %vm331, %v320, 0
        %v339 = vsel %vm331, %v321, 0
        %v342 = vsel %vm331, %v322, 0
        %v345 = vsel %vm331, %v323, 0
        %v348 = vsel %vm331, %v324, 0
        %v351 = vsel %vm331, %v325, 0
        %v354 = vsel %vm331, %v326, 0
        %356 = vmatprep.subr.mxu0 %v328
        %357 = vmatpush1.msra.mxu0 %v327
        %358 = vmatprep.subr.mxu0 %v330
        %359 = vmatpush1.msra.mxu0 %v329
        %360 = vmatprep.subr.mxu0 0.0
        %361 = vmatpush1.msra.mxu0 0.0
        %362 = vmatprep.subr.mxu0 0.0
        %363 = vmatpush1.msra.mxu0 0.0
        %364 = vmatprep.subr.mxu0 0.0
        %365 = vmatpush1.msra.mxu0 0.0
        %366 = vmatprep.subr.mxu0 0.0
        %367 = vmatpush1.msra.mxu0 0.0
        %368 = vmatprep.subr.mxu0 0.0
        %369 = vmatpush1.msra.mxu0 0.0
        %370 = vmatprep.subr.mxu0 0.0
        %371 = vmatpush1.msra.mxu0 0.0
        %372 = vmatprep.subr.mxu0 0.0
        %373 = vmatpush1.msra.mxu0 0.0
        %374 = vmatprep.subr.mxu0 0.0
        %375 = vmatpush1.msra.mxu0 0.0
        %376 = vmatprep.subr.mxu0 0.0
        %377 = vmatpush1.msra.mxu0 0.0
        %378 = vmatprep.subr.mxu0 0.0
        %379 = vmatpush1.msra.mxu0 0.0
        %380 = vmatprep.subr.mxu0 0.0
        %381 = vmatpush1.msra.mxu0 0.0
        %382 = vmatprep.subr.mxu0 0.0
        %383 = vmatpush1.msra.mxu0 0.0
        %384 = vmatprep.subr.mxu0 0.0
        %385 = vmatpush1.msra.mxu0 0.0
        %386 = vmatprep.subr.mxu0 0.0
        %387 = vmatpush1.msra.mxu0 0.0
        %388 = vmatprep.subr.mxu0 0.0
        %389 = vmatpush1.msra.mxu0 0.0
        %390 = vmatprep.subr.mxu0 0.0
        %391 = vmatpush1.msra.mxu0 0.0
        %392 = vmatprep.subr.mxu0 0.0
        %393 = vmatpush1.msra.mxu0 0.0
        %394 = vmatprep.subr.mxu0 0.0
        %395 = vmatpush1.msra.mxu0 0.0
        %396 = vmatprep.subr.mxu0 0.0
        %397 = vmatpush1.msra.mxu0 0.0
        %398 = vmatprep.subr.mxu0 0.0
        %399 = vmatpush1.msra.mxu0 0.0
        %400 = vmatprep.subr.mxu0 0.0
        %401 = vmatpush1.msra.mxu0 0.0
        %402 = vmatprep.subr.mxu0 0.0
        %403 = vmatpush1.msra.mxu0 0.0
        %404 = vmatprep.subr.mxu0 0.0
        %405 = vmatpush1.msra.mxu0 0.0
        %406 = vmatprep.subr.mxu0 0.0
        %407 = vmatpush1.msra.mxu0 0.0
        %408 = vmatprep.subr.mxu0 0.0
        %409 = vmatpush1.msra.mxu0 0.0
        %410 = vmatprep.subr.mxu0 0.0
        %411 = vmatpush1.msra.mxu0 0.0
        %412 = vmatprep.subr.mxu0 0.0
        %413 = vmatpush1.msra.mxu0 0.0
        %414 = vmatprep.subr.mxu0 0.0
        %415 = vmatpush1.msra.mxu0 0.0
        %416 = vmatprep.subr.mxu0 0.0
        %417 = vmatpush1.msra.mxu0 0.0
        %418 = vmatprep.subr.mxu0 0.0
        %419 = vmatpush1.msra.mxu0 0.0
        %420 = vmatprep.mubr.f32.mxu0 0.0
        %421 = vmatmul.mubr.f32.gmra.mrb[0].mxu0 %v333
        %v422 = vpop.f32.mrb[0].mxu0
        %v423 = vadd.f32 0.0, %v422
        %v424 = vpop.f32.mrb[0].mxu0
        %v425 = vadd.f32 0.0, %v424
        %426 = vmatprep.mubr.f32.mxu0 0.0
        %427 = vmatmul.mubr.f32.gmra.mrb[0].mxu0 %v336
        %v428 = vpop.f32.mrb[0].mxu0
        %v429 = vadd.f32 0.0, %v428
        %v430 = vpop.f32.mrb[0].mxu0
        %v431 = vadd.f32 0.0, %v430
        %432 = vmatprep.mubr.f32.mxu0 0.0
        %433 = vmatmul.mubr.f32.gmra.mrb[0].mxu0 %v339
        %v434 = vpop.f32.mrb[0].mxu0
        %v435 = vadd.f32 0.0, %v434
        %v436 = vpop.f32.mrb[0].mxu0
        %v437 = vadd.f32 0.0, %v436
        %438 = vmatprep.mubr.f32.mxu0 0.0
        %439 = vmatmul.mubr.f32.gmra.mrb[0].mxu0 %v342
        %v440 = vpop.f32.mrb[0].mxu0
        %v441 = vadd.f32 0.0, %v440
        %v442 = vpop.f32.mrb[0].mxu0
        %v443 = vadd.f32 0.0, %v442
        %444 = vmatprep.mubr.f32.mxu0 0.0
        %445 = vmatmul.mubr.f32.gmra.mrb[0].mxu0 %v345
        %v446 = vpop.f32.mrb[0].mxu0
        %v447 = vadd.f32 0.0, %v446
        %v448 = vpop.f32.mrb[0].mxu0
        %v449 = vadd.f32 0.0, %v448
        %450 = vmatprep.mubr.f32.mxu0 0.0
        %451 = vmatmul.mubr.f32.gmra.mrb[0].mxu0 %v348
        %v452 = vpop.f32.mrb[0].mxu0
        %v453 = vadd.f32 0.0, %v452
        %v454 = vpop.f32.mrb[0].mxu0
        %v455 = vadd.f32 0.0, %v454
        %456 = vmatprep.mubr.f32.mxu0 0.0
        %457 = vmatmul.mubr.f32.gmra.mrb[0].mxu0 %v351
        %v458 = vpop.f32.mrb[0].mxu0
        %v459 = vadd.f32 0.0, %v458
        %v460 = vpop.f32.mrb[0].mxu0
        %v461 = vadd.f32 0.0, %v460
        %462 = vmatprep.mubr.f32.mxu0 0.0
        %463 = vmatmul.mubr.f32.gmra.mrb[0].mxu0 %v354
        %v464 = vpop.f32.mrb[0].mxu0
        %v465 = vadd.f32 0.0, %v464
        %v466 = vpop.f32.mrb[0].mxu0
        %v467 = vadd.f32 0.0, %v466
        %468 = vdwg.mxu0
        %v469 = vld [vmem:[%s262] sm:$0xff]
        %v470 = vld [vmem:[%s262 + $0x8] sm:$0xff]
        %v471 = vld [vmem:[%s262 + $0x10] sm:$0xff]
        %v472 = vld [vmem:[%s262 + $0x18] sm:$0xff]
        %v473 = vld [vmem:[%s262 + $0x20] sm:$0xff]
        %v474 = vld [vmem:[%s262 + $0x28] sm:$0xff]
        %v475 = vld [vmem:[%s262 + $0x30] sm:$0xff]
        %v476 = vld [vmem:[%s262 + $0x38] sm:$0xff]
        %v478 = vsel %vm331, %v469, 0
        %v481 = vsel %vm331, %v470, 0
        %v484 = vsel %vm331, %v471, 0
        %v487 = vsel %vm331, %v472, 0
        %v490 = vsel %vm331, %v473, 0
        %v493 = vsel %vm331, %v474, 0
        %v496 = vsel %vm331, %v475, 0
        %v499 = vsel %vm331, %v476, 0
        %501 = vmatprep.subr.mxu0 %v328
        %502 = vmatpush1.msra.mxu0 %v327
        %503 = vmatprep.subr.mxu0 %v330
        %504 = vmatpush1.msra.mxu0 %v329
        %505 = vmatprep.subr.mxu0 0.0
        %506 = vmatpush1.msra.mxu0 0.0
        %507 = vmatprep.subr.mxu0 0.0
        %508 = vmatpush1.msra.mxu0 0.0
        %509 = vmatprep.subr.mxu0 0.0
        %510 = vmatpush1.msra.mxu0 0.0
        %511 = vmatprep.subr.mxu0 0.0
        %512 = vmatpush1.msra.mxu0 0.0
        %513 = vmatprep.subr.mxu0 0.0
        %514 = vmatpush1.msra.mxu0 0.0
        %515 = vmatprep.subr.mxu0 0.0
        %516 = vmatpush1.msra.mxu0 0.0
        %517 = vmatprep.subr.mxu0 0.0
        %518 = vmatpush1.msra.mxu0 0.0
        %519 = vmatprep.subr.mxu0 0.0
        %520 = vmatpush1.msra.mxu0 0.0
        %521 = vmatprep.subr.mxu0 0.0
        %522 = vmatpush1.msra.mxu0 0.0
        %523 = vmatprep.subr.mxu0 0.0
        %524 = vmatpush1.msra.mxu0 0.0
        %525 = vmatprep.subr.mxu0 0.0
        %526 = vmatpush1.msra.mxu0 0.0
        %527 = vmatprep.subr.mxu0 0.0
        %528 = vmatpush1.msra.mxu0 0.0
        %529 = vmatprep.subr.mxu0 0.0
        %530 = vmatpush1.msra.mxu0 0.0
        %531 = vmatprep.subr.mxu0 0.0
        %532 = vmatpush1.msra.mxu0 0.0
        %533 = vmatprep.subr.mxu0 0.0
        %534 = vmatpush1.msra.mxu0 0.0
        %535 = vmatprep.subr.mxu0 0.0
        %536 = vmatpush1.msra.mxu0 0.0
        %537 = vmatprep.subr.mxu0 0.0
        %538 = vmatpush1.msra.mxu0 0.0
        %539 = vmatprep.subr.mxu0 0.0
        %540 = vmatpush1.msra.mxu0 0.0
        %541 = vmatprep.subr.mxu0 0.0
        %542 = vmatpush1.msra.mxu0 0.0
        %543 = vmatprep.subr.mxu0 0.0
        %544 = vmatpush1.msra.mxu0 0.0
        %545 = vmatprep.subr.mxu0 0.0
        %546 = vmatpush1.msra.mxu0 0.0
        %547 = vmatprep.subr.mxu0 0.0
        %548 = vmatpush1.msra.mxu0 0.0
        %549 = vmatprep.subr.mxu0 0.0
        %550 = vmatpush1.msra.mxu0 0.0
        %551 = vmatprep.subr.mxu0 0.0
        %552 = vmatpush1.msra.mxu0 0.0
        %553 = vmatprep.subr.mxu0 0.0
        %554 = vmatpush1.msra.mxu0 0.0
        %555 = vmatprep.subr.mxu0 0.0
        %556 = vmatpush1.msra.mxu0 0.0
        %557 = vmatprep.subr.mxu0 0.0
        %558 = vmatpush1.msra.mxu0 0.0
        %559 = vmatprep.subr.mxu0 0.0
        %560 = vmatpush1.msra.mxu0 0.0
        %561 = vmatprep.subr.mxu0 0.0
        %562 = vmatpush1.msra.mxu0 0.0
        %563 = vmatprep.subr.mxu0 0.0
        %564 = vmatpush1.msra.mxu0 0.0
        %565 = vmatprep.mubr.f32.mxu0 0.0
        %566 = vmatmul.mubr.f32.gmra.mrb[0].mxu0 %v478
        %v567 = vpop.f32.mrb[0].mxu0
        %v568 = vadd.f32 0.0, %v567
        %v569 = vpop.f32.mrb[0].mxu0
        %v570 = vadd.f32 0.0, %v569
        %571 = vmatprep.mubr.f32.mxu0 0.0
        %572 = vmatmul.mubr.f32.gmra.mrb[0].mxu0 %v481
        %v573 = vpop.f32.mrb[0].mxu0
        %v574 = vadd.f32 0.0, %v573
        %v575 = vpop.f32.mrb[0].mxu0
        %v576 = vadd.f32 0.0, %v575
        %577 = vmatprep.mubr.f32.mxu0 0.0
        %578 = vmatmul.mubr.f32.gmra.mrb[0].mxu0 %v484
        %v579 = vpop.f32.mrb[0].mxu0
        %v580 = vadd.f32 0.0, %v579
        %v581 = vpop.f32.mrb[0].mxu0
        %v582 = vadd.f32 0.0, %v581
        %583 = vmatprep.mubr.f32.mxu0 0.0
        %584 = vmatmul.mubr.f32.gmra.mrb[0].mxu0 %v487
        %v585 = vpop.f32.mrb[0].mxu0
        %v586 = vadd.f32 0.0, %v585
        %v587 = vpop.f32.mrb[0].mxu0
        %v588 = vadd.f32 0.0, %v587
        %589 = vmatprep.mubr.f32.mxu0 0.0
        %590 = vmatmul.mubr.f32.gmra.mrb[0].mxu0 %v490
        %v591 = vpop.f32.mrb[0].mxu0
        %v592 = vadd.f32 0.0, %v591
        %v593 = vpop.f32.mrb[0].mxu0
        %v594 = vadd.f32 0.0, %v593
        %595 = vmatprep.mubr.f32.mxu0 0.0
        %596 = vmatmul.mubr.f32.gmra.mrb[0].mxu0 %v493
        %v597 = vpop.f32.mrb[0].mxu0
        %v598 = vadd.f32 0.0, %v597
        %v599 = vpop.f32.mrb[0].mxu0
        %v600 = vadd.f32 0.0, %v599
        %601 = vmatprep.mubr.f32.mxu0 0.0
        %602 = vmatmul.mubr.f32.gmra.mrb[0].mxu0 %v496
        %v603 = vpop.f32.mrb[0].mxu0
        %v604 = vadd.f32 0.0, %v603
        %v605 = vpop.f32.mrb[0].mxu0
        %v606 = vadd.f32 0.0, %v605
        %607 = vmatprep.mubr.f32.mxu0 0.0
        %608 = vmatmul.mubr.f32.gmra.mrb[0].mxu0 %v499
        %v609 = vpop.f32.mrb[0].mxu0
        %v610 = vadd.f32 0.0, %v609
        %v611 = vpop.f32.mrb[0].mxu0
        %v612 = vadd.f32 0.0, %v611
        %613 = vdwg.mxu0
        %614 = vst [vmem:[#allocation2] sm:$0xff] %v423
        %615 = vst [vmem:[#allocation2 + $0x80] sm:$0xff] %v429
        %616 = vst [vmem:[#allocation2 + $0x20] sm:$0xff] %v568
        %617 = vst [vmem:[#allocation2 + $0xa0] sm:$0xff] %v574
        %618 = vst [vmem:[#allocation2 + $0x40] sm:$0xff] %v425
        %619 = vst [vmem:[#allocation2 + $0xc0] sm:$0xff] %v431
        %620 = vst [vmem:[#allocation2 + $0x60] sm:$0xff] %v570
        %621 = vst [vmem:[#allocation2 + $0xe0] sm:$0xff] %v576
        %622 = vst [vmem:[#allocation2 + $0x8] sm:$0xff] %v435
        %623 = vst [vmem:[#allocation2 + $0x88] sm:$0xff] %v441
        %624 = vst [vmem:[#allocation2 + $0x28] sm:$0xff] %v580
        %625 = vst [vmem:[#allocation2 + $0xa8] sm:$0xff] %v586
        %626 = vst [vmem:[#allocation2 + $0x48] sm:$0xff] %v437
        %627 = vst [vmem:[#allocation2 + $0xc8] sm:$0xff] %v443
        %628 = vst [vmem:[#allocation2 + $0x68] sm:$0xff] %v582
        %629 = vst [vmem:[#allocation2 + $0xe8] sm:$0xff] %v588
        %630 = vst [vmem:[#allocation2 + $0x10] sm:$0xff] %v447
        %631 = vst [vmem:[#allocation2 + $0x90] sm:$0xff] %v453
        %632 = vst [vmem:[#allocation2 + $0x30] sm:$0xff] %v592
        %633 = vst [vmem:[#allocation2 + $0xb0] sm:$0xff] %v598
        %634 = vst [vmem:[#allocation2 + $0x50] sm:$0xff] %v449
        %635 = vst [vmem:[#allocation2 + $0xd0] sm:$0xff] %v455
        %636 = vst [vmem:[#allocation2 + $0x70] sm:$0xff] %v594
        %637 = vst [vmem:[#allocation2 + $0xf0] sm:$0xff] %v600
        %638 = vst [vmem:[#allocation2 + $0x18] sm:$0xff] %v459
        %639 = vst [vmem:[#allocation2 + $0x98] sm:$0xff] %v465
        %640 = vst [vmem:[#allocation2 + $0x38] sm:$0xff] %v604
        %641 = vst [vmem:[#allocation2 + $0xb8] sm:$0xff] %v610
        %642 = vst [vmem:[#allocation2 + $0x58] sm:$0xff] %v461
        %643 = vst [vmem:[#allocation2 + $0xd8] sm:$0xff] %v467
        %644 = vst [vmem:[#allocation2 + $0x78] sm:$0xff] %v606
        %645 = vst [vmem:[#allocation2 + $0xf8] sm:$0xff] %v612
        %v646 = vld [vmem:[#allocation9] sm:$0xff]
        %v647 = vld [vmem:[#allocation9 + $0x8] sm:$0xff]
        %v648 = vld [vmem:[#allocation9 + $0x10] sm:$0xff]
        %v649 = vld [vmem:[#allocation9 + $0x18] sm:$0xff]
        %v650 = vld [vmem:[#allocation2] sm:$0xff]
        %v651 = vld [vmem:[#allocation2 + $0x8] sm:$0xff]
        %v652 = vld [vmem:[#allocation2 + $0x10] sm:$0xff]
        %v653 = vld [vmem:[#allocation2 + $0x18] sm:$0xff]
        %v654 = vld [vmem:[#allocation2 + $0x20] sm:$0xff]
        %v655 = vld [vmem:[#allocation2 + $0x28] sm:$0xff]
        %v656 = vld [vmem:[#allocation2 + $0x30] sm:$0xff]
        %v657 = vld [vmem:[#allocation2 + $0x38] sm:$0xff]
        %v658 = vld [vmem:[#allocation2 + $0x40] sm:$0xff]
        %v659 = vld [vmem:[#allocation2 + $0x48] sm:$0xff]
        %v660 = vld [vmem:[#allocation2 + $0x50] sm:$0xff]
        %v661 = vld [vmem:[#allocation2 + $0x58] sm:$0xff]
        %v662 = vld [vmem:[#allocation2 + $0x60] sm:$0xff]
        %v663 = vld [vmem:[#allocation2 + $0x68] sm:$0xff]
        %v664 = vld [vmem:[#allocation2 + $0x70] sm:$0xff]
        %v665 = vld [vmem:[#allocation2 + $0x78] sm:$0xff]
        %v666 = vld [vmem:[#allocation2 + $0x80] sm:$0xff]
        %v667 = vld [vmem:[#allocation2 + $0x88] sm:$0xff]
        %v668 = vld [vmem:[#allocation2 + $0x90] sm:$0xff]
        %v669 = vld [vmem:[#allocation2 + $0x98] sm:$0xff]
        %v670 = vld [vmem:[#allocation2 + $0xa0] sm:$0xff]
        %v671 = vld [vmem:[#allocation2 + $0xa8] sm:$0xff]
        %v672 = vld [vmem:[#allocation2 + $0xb0] sm:$0xff]
        %v673 = vld [vmem:[#allocation2 + $0xb8] sm:$0xff]
        %v674 = vld [vmem:[#allocation2 + $0xc0] sm:$0xff]
        %v675 = vld [vmem:[#allocation2 + $0xc8] sm:$0xff]
        %v676 = vld [vmem:[#allocation2 + $0xd0] sm:$0xff]
        %v677 = vld [vmem:[#allocation2 + $0xd8] sm:$0xff]
        %v678 = vld [vmem:[#allocation2 + $0xe0] sm:$0xff]
        %v679 = vld [vmem:[#allocation2 + $0xe8] sm:$0xff]
        %v680 = vld [vmem:[#allocation2 + $0xf0] sm:$0xff]
        %v681 = vld [vmem:[#allocation2 + $0xf8] sm:$0xff]
        %v683 = vsel %vm331, %v646, 0
        %v686 = vsel %vm331, %v647, 0
        %v689 = vsel %vm331, %v648, 0
        %v692 = vsel %vm331, %v649, 0
        %694 = vmatprep.subr.mxu0 %v651
        %695 = vmatpush1.msra.mxu0 %v650
        %696 = vmatprep.subr.mxu0 %v667
        %697 = vmatpush1.msra.mxu0 %v666
        %698 = vmatprep.subr.mxu0 0.0
        %699 = vmatpush1.msra.mxu0 0.0
        %700 = vmatprep.subr.mxu0 0.0
        %701 = vmatpush1.msra.mxu0 0.0
        %702 = vmatprep.subr.mxu0 0.0
        %703 = vmatpush1.msra.mxu0 0.0
        %704 = vmatprep.subr.mxu0 0.0
        %705 = vmatpush1.msra.mxu0 0.0
        %706 = vmatprep.subr.mxu0 0.0
        %707 = vmatpush1.msra.mxu0 0.0
        %708 = vmatprep.subr.mxu0 0.0
        %709 = vmatpush1.msra.mxu0 0.0
        %710 = vmatprep.subr.mxu0 0.0
        %711 = vmatpush1.msra.mxu0 0.0
        %712 = vmatprep.subr.mxu0 0.0
        %713 = vmatpush1.msra.mxu0 0.0
        %714 = vmatprep.subr.mxu0 0.0
        %715 = vmatpush1.msra.mxu0 0.0
        %716 = vmatprep.subr.mxu0 0.0
        %717 = vmatpush1.msra.mxu0 0.0
        %718 = vmatprep.subr.mxu0 0.0
        %719 = vmatpush1.msra.mxu0 0.0
        %720 = vmatprep.subr.mxu0 0.0
        %721 = vmatpush1.msra.mxu0 0.0
        %722 = vmatprep.subr.mxu0 0.0
        %723 = vmatpush1.msra.mxu0 0.0
        %724 = vmatprep.subr.mxu0 0.0
        %725 = vmatpush1.msra.mxu0 0.0
        %726 = vmatprep.subr.mxu0 0.0
        %727 = vmatpush1.msra.mxu0 0.0
        %728 = vmatprep.subr.mxu0 0.0
        %729 = vmatpush1.msra.mxu0 0.0
        %730 = vmatprep.subr.mxu0 0.0
        %731 = vmatpush1.msra.mxu0 0.0
        %732 = vmatprep.subr.mxu0 0.0
        %733 = vmatpush1.msra.mxu0 0.0
        %734 = vmatprep.subr.mxu0 0.0
        %735 = vmatpush1.msra.mxu0 0.0
        %736 = vmatprep.subr.mxu0 0.0
        %737 = vmatpush1.msra.mxu0 0.0
        %738 = vmatprep.subr.mxu0 0.0
        %739 = vmatpush1.msra.mxu0 0.0
        %740 = vmatprep.subr.mxu0 0.0
        %741 = vmatpush1.msra.mxu0 0.0
        %742 = vmatprep.subr.mxu0 0.0
        %743 = vmatpush1.msra.mxu0 0.0
        %744 = vmatprep.subr.mxu0 0.0
        %745 = vmatpush1.msra.mxu0 0.0
        %746 = vmatprep.subr.mxu0 0.0
        %747 = vmatpush1.msra.mxu0 0.0
        %748 = vmatprep.subr.mxu0 0.0
        %749 = vmatpush1.msra.mxu0 0.0
        %750 = vmatprep.subr.mxu0 0.0
        %751 = vmatpush1.msra.mxu0 0.0
        %752 = vmatprep.subr.mxu0 0.0
        %753 = vmatpush1.msra.mxu0 0.0
        %754 = vmatprep.subr.mxu0 0.0
        %755 = vmatpush1.msra.mxu0 0.0
        %756 = vmatprep.subr.mxu0 0.0
        %757 = vmatpush1.msra.mxu0 0.0
        %758 = vmatprep.mubr.f32.mxu0 0.0
        %759 = vmatmul.mubr.f32.gmra.mrb[0].mxu0 %v683
        %v760 = vpop.f32.mrb[0].mxu0
        %v761 = vadd.f32 0.0, %v760
        %v762 = vpop.f32.mrb[0].mxu0
        %v763 = vadd.f32 0.0, %v762
        %764 = vmatprep.mubr.f32.mxu0 0.0
        %765 = vmatmul.mubr.f32.gmra.mrb[0].mxu0 %v686
        %v766 = vpop.f32.mrb[0].mxu0
        %v767 = vadd.f32 0.0, %v766
        %v768 = vpop.f32.mrb[0].mxu0
        %v769 = vadd.f32 0.0, %v768
        %770 = vmatprep.mubr.f32.mxu0 0.0
        %771 = vmatmul.mubr.f32.gmra.mrb[0].mxu0 %v689
        %v772 = vpop.f32.mrb[0].mxu0
        %v773 = vadd.f32 0.0, %v772
        %v774 = vpop.f32.mrb[0].mxu0
        %v775 = vadd.f32 0.0, %v774
        %776 = vmatprep.mubr.f32.mxu0 0.0
        %777 = vmatmul.mubr.f32.gmra.mrb[0].mxu0 %v692
        %v778 = vpop.f32.mrb[0].mxu0
        %v779 = vadd.f32 0.0, %v778
        %v780 = vpop.f32.mrb[0].mxu0
        %v781 = vadd.f32 0.0, %v780
        %782 = vdwg.mxu0
        %783 = vmatprep.subr.mxu0 %v653
        %784 = vmatpush1.msra.mxu0 %v652
        %785 = vmatprep.subr.mxu0 %v669
        %786 = vmatpush1.msra.mxu0 %v668
        %787 = vmatprep.subr.mxu0 0.0
        %788 = vmatpush1.msra.mxu0 0.0
        %789 = vmatprep.subr.mxu0 0.0
        %790 = vmatpush1.msra.mxu0 0.0
        %791 = vmatprep.subr.mxu0 0.0
        %792 = vmatpush1.msra.mxu0 0.0
        %793 = vmatprep.subr.mxu0 0.0
        %794 = vmatpush1.msra.mxu0 0.0
        %795 = vmatprep.subr.mxu0 0.0
        %796 = vmatpush1.msra.mxu0 0.0
        %797 = vmatprep.subr.mxu0 0.0
        %798 = vmatpush1.msra.mxu0 0.0
        %799 = vmatprep.subr.mxu0 0.0
        %800 = vmatpush1.msra.mxu0 0.0
        %801 = vmatprep.subr.mxu0 0.0
        %802 = vmatpush1.msra.mxu0 0.0
        %803 = vmatprep.subr.mxu0 0.0
        %804 = vmatpush1.msra.mxu0 0.0
        %805 = vmatprep.subr.mxu0 0.0
        %806 = vmatpush1.msra.mxu0 0.0
        %807 = vmatprep.subr.mxu0 0.0
        %808 = vmatpush1.msra.mxu0 0.0
        %809 = vmatprep.subr.mxu0 0.0
        %810 = vmatpush1.msra.mxu0 0.0
        %811 = vmatprep.subr.mxu0 0.0
        %812 = vmatpush1.msra.mxu0 0.0
        %813 = vmatprep.subr.mxu0 0.0
        %814 = vmatpush1.msra.mxu0 0.0
        %815 = vmatprep.subr.mxu0 0.0
        %816 = vmatpush1.msra.mxu0 0.0
        %817 = vmatprep.subr.mxu0 0.0
        %818 = vmatpush1.msra.mxu0 0.0
        %819 = vmatprep.subr.mxu0 0.0
        %820 = vmatpush1.msra.mxu0 0.0
        %821 = vmatprep.subr.mxu0 0.0
        %822 = vmatpush1.msra.mxu0 0.0
        %823 = vmatprep.subr.mxu0 0.0
        %824 = vmatpush1.msra.mxu0 0.0
        %825 = vmatprep.subr.mxu0 0.0
        %826 = vmatpush1.msra.mxu0 0.0
        %827 = vmatprep.subr.mxu0 0.0
        %828 = vmatpush1.msra.mxu0 0.0
        %829 = vmatprep.subr.mxu0 0.0
        %830 = vmatpush1.msra.mxu0 0.0
        %831 = vmatprep.subr.mxu0 0.0
        %832 = vmatpush1.msra.mxu0 0.0
        %833 = vmatprep.subr.mxu0 0.0
        %834 = vmatpush1.msra.mxu0 0.0
        %835 = vmatprep.subr.mxu0 0.0
        %836 = vmatpush1.msra.mxu0 0.0
        %837 = vmatprep.subr.mxu0 0.0
        %838 = vmatpush1.msra.mxu0 0.0
        %839 = vmatprep.subr.mxu0 0.0
        %840 = vmatpush1.msra.mxu0 0.0
        %841 = vmatprep.subr.mxu0 0.0
        %842 = vmatpush1.msra.mxu0 0.0
        %843 = vmatprep.subr.mxu0 0.0
        %844 = vmatpush1.msra.mxu0 0.0
        %845 = vmatprep.subr.mxu0 0.0
        %846 = vmatpush1.msra.mxu0 0.0
        %847 = vmatprep.mubr.f32.mxu0 0.0
        %848 = vmatmul.mubr.f32.gmra.mrb[0].mxu0 %v683
        %v849 = vpop.f32.mrb[0].mxu0
        %v850 = vadd.f32 0.0, %v849
        %v851 = vpop.f32.mrb[0].mxu0
        %v852 = vadd.f32 0.0, %v851
        %853 = vmatprep.mubr.f32.mxu0 0.0
        %854 = vmatmul.mubr.f32.gmra.mrb[0].mxu0 %v686
        %v855 = vpop.f32.mrb[0].mxu0
        %v856 = vadd.f32 0.0, %v855
        %v857 = vpop.f32.mrb[0].mxu0
        %v858 = vadd.f32 0.0, %v857
        %859 = vmatprep.mubr.f32.mxu0 0.0
        %860 = vmatmul.mubr.f32.gmra.mrb[0].mxu0 %v689
        %v861 = vpop.f32.mrb[0].mxu0
        %v862 = vadd.f32 0.0, %v861
        %v863 = vpop.f32.mrb[0].mxu0
        %v864 = vadd.f32 0.0, %v863
        %865 = vmatprep.mubr.f32.mxu0 0.0
        %866 = vmatmul.mubr.f32.gmra.mrb[0].mxu0 %v692
        %v867 = vpop.f32.mrb[0].mxu0
        %v868 = vadd.f32 0.0, %v867
        %v869 = vpop.f32.mrb[0].mxu0
        %v870 = vadd.f32 0.0, %v869
        %871 = vdwg.mxu0
        %872 = vmatprep.subr.mxu0 %v655
        %873 = vmatpush1.msra.mxu0 %v654
        %874 = vmatprep.subr.mxu0 %v671
        %875 = vmatpush1.msra.mxu0 %v670
        %876 = vmatprep.subr.mxu0 0.0
        %877 = vmatpush1.msra.mxu0 0.0
        %878 = vmatprep.subr.mxu0 0.0
        %879 = vmatpush1.msra.mxu0 0.0
        %880 = vmatprep.subr.mxu0 0.0
        %881 = vmatpush1.msra.mxu0 0.0
        %882 = vmatprep.subr.mxu0 0.0
        %883 = vmatpush1.msra.mxu0 0.0
        %884 = vmatprep.subr.mxu0 0.0
        %885 = vmatpush1.msra.mxu0 0.0
        %886 = vmatprep.subr.mxu0 0.0
        %887 = vmatpush1.msra.mxu0 0.0
        %888 = vmatprep.subr.mxu0 0.0
        %889 = vmatpush1.msra.mxu0 0.0
        %890 = vmatprep.subr.mxu0 0.0
        %891 = vmatpush1.msra.mxu0 0.0
        %892 = vmatprep.subr.mxu0 0.0
        %893 = vmatpush1.msra.mxu0 0.0
        %894 = vmatprep.subr.mxu0 0.0
        %895 = vmatpush1.msra.mxu0 0.0
        %896 = vmatprep.subr.mxu0 0.0
        %897 = vmatpush1.msra.mxu0 0.0
        %898 = vmatprep.subr.mxu0 0.0
        %899 = vmatpush1.msra.mxu0 0.0
        %900 = vmatprep.subr.mxu0 0.0
        %901 = vmatpush1.msra.mxu0 0.0
        %902 = vmatprep.subr.mxu0 0.0
        %903 = vmatpush1.msra.mxu0 0.0
        %904 = vmatprep.subr.mxu0 0.0
        %905 = vmatpush1.msra.mxu0 0.0
        %906 = vmatprep.subr.mxu0 0.0
        %907 = vmatpush1.msra.mxu0 0.0
        %908 = vmatprep.subr.mxu0 0.0
        %909 = vmatpush1.msra.mxu0 0.0
        %910 = vmatprep.subr.mxu0 0.0
        %911 = vmatpush1.msra.mxu0 0.0
        %912 = vmatprep.subr.mxu0 0.0
        %913 = vmatpush1.msra.mxu0 0.0
        %914 = vmatprep.subr.mxu0 0.0
        %915 = vmatpush1.msra.mxu0 0.0
        %916 = vmatprep.subr.mxu0 0.0
        %917 = vmatpush1.msra.mxu0 0.0
        %918 = vmatprep.subr.mxu0 0.0
        %919 = vmatpush1.msra.mxu0 0.0
        %920 = vmatprep.subr.mxu0 0.0
        %921 = vmatpush1.msra.mxu0 0.0
        %922 = vmatprep.subr.mxu0 0.0
        %923 = vmatpush1.msra.mxu0 0.0
        %924 = vmatprep.subr.mxu0 0.0
        %925 = vmatpush1.msra.mxu0 0.0
        %926 = vmatprep.subr.mxu0 0.0
        %927 = vmatpush1.msra.mxu0 0.0
        %928 = vmatprep.subr.mxu0 0.0
        %929 = vmatpush1.msra.mxu0 0.0
        %930 = vmatprep.subr.mxu0 0.0
        %931 = vmatpush1.msra.mxu0 0.0
        %932 = vmatprep.subr.mxu0 0.0
        %933 = vmatpush1.msra.mxu0 0.0
        %934 = vmatprep.subr.mxu0 0.0
        %935 = vmatpush1.msra.mxu0 0.0
        %936 = vmatprep.mubr.f32.mxu0 0.0
        %937 = vmatmul.mubr.f32.gmra.mrb[0].mxu0 %v683
        %v938 = vpop.f32.mrb[0].mxu0
        %v939 = vadd.f32 0.0, %v938
        %v940 = vpop.f32.mrb[0].mxu0
        %v941 = vadd.f32 0.0, %v940
        %942 = vmatprep.mubr.f32.mxu0 0.0
        %943 = vmatmul.mubr.f32.gmra.mrb[0].mxu0 %v686
        %v944 = vpop.f32.mrb[0].mxu0
        %v945 = vadd.f32 0.0, %v944
        %v946 = vpop.f32.mrb[0].mxu0
        %v947 = vadd.f32 0.0, %v946
        %948 = vmatprep.mubr.f32.mxu0 0.0
        %949 = vmatmul.mubr.f32.gmra.mrb[0].mxu0 %v689
        %v950 = vpop.f32.mrb[0].mxu0
        %v951 = vadd.f32 0.0, %v950
        %v952 = vpop.f32.mrb[0].mxu0
        %v953 = vadd.f32 0.0, %v952
        %954 = vmatprep.mubr.f32.mxu0 0.0
        %955 = vmatmul.mubr.f32.gmra.mrb[0].mxu0 %v692
        %v956 = vpop.f32.mrb[0].mxu0
        %v957 = vadd.f32 0.0, %v956
        %v958 = vpop.f32.mrb[0].mxu0
        %v959 = vadd.f32 0.0, %v958
        %960 = vdwg.mxu0
        %961 = vmatprep.subr.mxu0 %v657
        %962 = vmatpush1.msra.mxu0 %v656
        %963 = vmatprep.subr.mxu0 %v673
        %964 = vmatpush1.msra.mxu0 %v672
        %965 = vmatprep.subr.mxu0 0.0
        %966 = vmatpush1.msra.mxu0 0.0
        %967 = vmatprep.subr.mxu0 0.0
        %968 = vmatpush1.msra.mxu0 0.0
        %969 = vmatprep.subr.mxu0 0.0
        %970 = vmatpush1.msra.mxu0 0.0
        %971 = vmatprep.subr.mxu0 0.0
        %972 = vmatpush1.msra.mxu0 0.0
        %973 = vmatprep.subr.mxu0 0.0
        %974 = vmatpush1.msra.mxu0 0.0
        %975 = vmatprep.subr.mxu0 0.0
        %976 = vmatpush1.msra.mxu0 0.0
        %977 = vmatprep.subr.mxu0 0.0
        %978 = vmatpush1.msra.mxu0 0.0
        %979 = vmatprep.subr.mxu0 0.0
        %980 = vmatpush1.msra.mxu0 0.0
        %981 = vmatprep.subr.mxu0 0.0
        %982 = vmatpush1.msra.mxu0 0.0
        %983 = vmatprep.subr.mxu0 0.0
        %984 = vmatpush1.msra.mxu0 0.0
        %985 = vmatprep.subr.mxu0 0.0
        %986 = vmatpush1.msra.mxu0 0.0
        %987 = vmatprep.subr.mxu0 0.0
        %988 = vmatpush1.msra.mxu0 0.0
        %989 = vmatprep.subr.mxu0 0.0
        %990 = vmatpush1.msra.mxu0 0.0
        %991 = vmatprep.subr.mxu0 0.0
        %992 = vmatpush1.msra.mxu0 0.0
        %993 = vmatprep.subr.mxu0 0.0
        %994 = vmatpush1.msra.mxu0 0.0
        %995 = vmatprep.subr.mxu0 0.0
        %996 = vmatpush1.msra.mxu0 0.0
        %997 = vmatprep.subr.mxu0 0.0
        %998 = vmatpush1.msra.mxu0 0.0
        %999 = vmatprep.subr.mxu0 0.0
        %1000 = vmatpush1.msra.mxu0 0.0
        %1001 = vmatprep.subr.mxu0 0.0
        %1002 = vmatpush1.msra.mxu0 0.0
        %1003 = vmatprep.subr.mxu0 0.0
        %1004 = vmatpush1.msra.mxu0 0.0
        %1005 = vmatprep.subr.mxu0 0.0
        %1006 = vmatpush1.msra.mxu0 0.0
        %1007 = vmatprep.subr.mxu0 0.0
        %1008 = vmatpush1.msra.mxu0 0.0
        %1009 = vmatprep.subr.mxu0 0.0
        %1010 = vmatpush1.msra.mxu0 0.0
        %1011 = vmatprep.subr.mxu0 0.0
        %1012 = vmatpush1.msra.mxu0 0.0
        %1013 = vmatprep.subr.mxu0 0.0
        %1014 = vmatpush1.msra.mxu0 0.0
        %1015 = vmatprep.subr.mxu0 0.0
        %1016 = vmatpush1.msra.mxu0 0.0
        %1017 = vmatprep.subr.mxu0 0.0
        %1018 = vmatpush1.msra.mxu0 0.0
        %1019 = vmatprep.subr.mxu0 0.0
        %1020 = vmatpush1.msra.mxu0 0.0
        %1021 = vmatprep.subr.mxu0 0.0
        %1022 = vmatpush1.msra.mxu0 0.0
        %1023 = vmatprep.subr.mxu0 0.0
        %1024 = vmatpush1.msra.mxu0 0.0
        %1025 = vmatprep.mubr.f32.mxu0 0.0
        %1026 = vmatmul.mubr.f32.gmra.mrb[0].mxu0 %v683
        %v1027 = vpop.f32.mrb[0].mxu0
        %v1028 = vadd.f32 0.0, %v1027
        %v1029 = vpop.f32.mrb[0].mxu0
        %v1030 = vadd.f32 0.0, %v1029
        %1031 = vmatprep.mubr.f32.mxu0 0.0
        %1032 = vmatmul.mubr.f32.gmra.mrb[0].mxu0 %v686
        %v1033 = vpop.f32.mrb[0].mxu0
        %v1034 = vadd.f32 0.0, %v1033
        %v1035 = vpop.f32.mrb[0].mxu0
        %v1036 = vadd.f32 0.0, %v1035
        %1037 = vmatprep.mubr.f32.mxu0 0.0
        %1038 = vmatmul.mubr.f32.gmra.mrb[0].mxu0 %v689
        %v1039 = vpop.f32.mrb[0].mxu0
        %v1040 = vadd.f32 0.0, %v1039
        %v1041 = vpop.f32.mrb[0].mxu0
        %v1042 = vadd.f32 0.0, %v1041
        %1043 = vmatprep.mubr.f32.mxu0 0.0
        %1044 = vmatmul.mubr.f32.gmra.mrb[0].mxu0 %v692
        %v1045 = vpop.f32.mrb[0].mxu0
        %v1046 = vadd.f32 0.0, %v1045
        %v1047 = vpop.f32.mrb[0].mxu0
        %v1048 = vadd.f32 0.0, %v1047
        %1049 = vdwg.mxu0
        %1050 = vmatprep.subr.mxu0 %v659
        %1051 = vmatpush1.msra.mxu0 %v658
        %1052 = vmatprep.subr.mxu0 %v675
        %1053 = vmatpush1.msra.mxu0 %v674
        %1054 = vmatprep.subr.mxu0 0.0
        %1055 = vmatpush1.msra.mxu0 0.0
        %1056 = vmatprep.subr.mxu0 0.0
        %1057 = vmatpush1.msra.mxu0 0.0
        %1058 = vmatprep.subr.mxu0 0.0
        %1059 = vmatpush1.msra.mxu0 0.0
        %1060 = vmatprep.subr.mxu0 0.0
        %1061 = vmatpush1.msra.mxu0 0.0
        %1062 = vmatprep.subr.mxu0 0.0
        %1063 = vmatpush1.msra.mxu0 0.0
        %1064 = vmatprep.subr.mxu0 0.0
        %1065 = vmatpush1.msra.mxu0 0.0
        %1066 = vmatprep.subr.mxu0 0.0
        %1067 = vmatpush1.msra.mxu0 0.0
        %1068 = vmatprep.subr.mxu0 0.0
        %1069 = vmatpush1.msra.mxu0 0.0
        %1070 = vmatprep.subr.mxu0 0.0
        %1071 = vmatpush1.msra.mxu0 0.0
        %1072 = vmatprep.subr.mxu0 0.0
        %1073 = vmatpush1.msra.mxu0 0.0
        %1074 = vmatprep.subr.mxu0 0.0
        %1075 = vmatpush1.msra.mxu0 0.0
        %1076 = vmatprep.subr.mxu0 0.0
        %1077 = vmatpush1.msra.mxu0 0.0
        %1078 = vmatprep.subr.mxu0 0.0
        %1079 = vmatpush1.msra.mxu0 0.0
        %1080 = vmatprep.subr.mxu0 0.0
        %1081 = vmatpush1.msra.mxu0 0.0
        %1082 = vmatprep.subr.mxu0 0.0
        %1083 = vmatpush1.msra.mxu0 0.0
        %1084 = vmatprep.subr.mxu0 0.0
        %1085 = vmatpush1.msra.mxu0 0.0
        %1086 = vmatprep.subr.mxu0 0.0
        %1087 = vmatpush1.msra.mxu0 0.0
        %1088 = vmatprep.subr.mxu0 0.0
        %1089 = vmatpush1.msra.mxu0 0.0
        %1090 = vmatprep.subr.mxu0 0.0
        %1091 = vmatpush1.msra.mxu0 0.0
        %1092 = vmatprep.subr.mxu0 0.0
        %1093 = vmatpush1.msra.mxu0 0.0
        %1094 = vmatprep.subr.mxu0 0.0
        %1095 = vmatpush1.msra.mxu0 0.0
        %1096 = vmatprep.subr.mxu0 0.0
        %1097 = vmatpush1.msra.mxu0 0.0
        %1098 = vmatprep.subr.mxu0 0.0
        %1099 = vmatpush1.msra.mxu0 0.0
        %1100 = vmatprep.subr.mxu0 0.0
        %1101 = vmatpush1.msra.mxu0 0.0
        %1102 = vmatprep.subr.mxu0 0.0
        %1103 = vmatpush1.msra.mxu0 0.0
        %1104 = vmatprep.subr.mxu0 0.0
        %1105 = vmatpush1.msra.mxu0 0.0
        %1106 = vmatprep.subr.mxu0 0.0
        %1107 = vmatpush1.msra.mxu0 0.0
        %1108 = vmatprep.subr.mxu0 0.0
        %1109 = vmatpush1.msra.mxu0 0.0
        %1110 = vmatprep.subr.mxu0 0.0
        %1111 = vmatpush1.msra.mxu0 0.0
        %1112 = vmatprep.subr.mxu0 0.0
        %1113 = vmatpush1.msra.mxu0 0.0
        %1114 = vmatprep.mubr.f32.mxu0 0.0
        %1115 = vmatmul.mubr.f32.gmra.mrb[0].mxu0 %v683
        %v1116 = vpop.f32.mrb[0].mxu0
        %v1117 = vadd.f32 0.0, %v1116
        %v1118 = vpop.f32.mrb[0].mxu0
        %v1119 = vadd.f32 0.0, %v1118
        %1120 = vmatprep.mubr.f32.mxu0 0.0
        %1121 = vmatmul.mubr.f32.gmra.mrb[0].mxu0 %v686
        %v1122 = vpop.f32.mrb[0].mxu0
        %v1123 = vadd.f32 0.0, %v1122
        %v1124 = vpop.f32.mrb[0].mxu0
        %v1125 = vadd.f32 0.0, %v1124
        %1126 = vmatprep.mubr.f32.mxu0 0.0
        %1127 = vmatmul.mubr.f32.gmra.mrb[0].mxu0 %v689
        %v1128 = vpop.f32.mrb[0].mxu0
        %v1129 = vadd.f32 0.0, %v1128
        %v1130 = vpop.f32.mrb[0].mxu0
        %v1131 = vadd.f32 0.0, %v1130
        %1132 = vmatprep.mubr.f32.mxu0 0.0
        %1133 = vmatmul.mubr.f32.gmra.mrb[0].mxu0 %v692
        %v1134 = vpop.f32.mrb[0].mxu0
        %v1135 = vadd.f32 0.0, %v1134
        %v1136 = vpop.f32.mrb[0].mxu0
        %v1137 = vadd.f32 0.0, %v1136
        %1138 = vdwg.mxu0
        %1139 = vmatprep.subr.mxu0 %v661
        %1140 = vmatpush1.msra.mxu0 %v660
        %1141 = vmatprep.subr.mxu0 %v677
        %1142 = vmatpush1.msra.mxu0 %v676
        %1143 = vmatprep.subr.mxu0 0.0
        %1144 = vmatpush1.msra.mxu0 0.0
        %1145 = vmatprep.subr.mxu0 0.0
        %1146 = vmatpush1.msra.mxu0 0.0
        %1147 = vmatprep.subr.mxu0 0.0
        %1148 = vmatpush1.msra.mxu0 0.0
        %1149 = vmatprep.subr.mxu0 0.0
        %1150 = vmatpush1.msra.mxu0 0.0
        %1151 = vmatprep.subr.mxu0 0.0
        %1152 = vmatpush1.msra.mxu0 0.0
        %1153 = vmatprep.subr.mxu0 0.0
        %1154 = vmatpush1.msra.mxu0 0.0
        %1155 = vmatprep.subr.mxu0 0.0
        %1156 = vmatpush1.msra.mxu0 0.0
        %1157 = vmatprep.subr.mxu0 0.0
        %1158 = vmatpush1.msra.mxu0 0.0
        %1159 = vmatprep.subr.mxu0 0.0
        %1160 = vmatpush1.msra.mxu0 0.0
        %1161 = vmatprep.subr.mxu0 0.0
        %1162 = vmatpush1.msra.mxu0 0.0
        %1163 = vmatprep.subr.mxu0 0.0
        %1164 = vmatpush1.msra.mxu0 0.0
        %1165 = vmatprep.subr.mxu0 0.0
        %1166 = vmatpush1.msra.mxu0 0.0
        %1167 = vmatprep.subr.mxu0 0.0
        %1168 = vmatpush1.msra.mxu0 0.0
        %1169 = vmatprep.subr.mxu0 0.0
        %1170 = vmatpush1.msra.mxu0 0.0
        %1171 = vmatprep.subr.mxu0 0.0
        %1172 = vmatpush1.msra.mxu0 0.0
        %1173 = vmatprep.subr.mxu0 0.0
        %1174 = vmatpush1.msra.mxu0 0.0
        %1175 = vmatprep.subr.mxu0 0.0
        %1176 = vmatpush1.msra.mxu0 0.0
        %1177 = vmatprep.subr.mxu0 0.0
        %1178 = vmatpush1.msra.mxu0 0.0
        %1179 = vmatprep.subr.mxu0 0.0
        %1180 = vmatpush1.msra.mxu0 0.0
        %1181 = vmatprep.subr.mxu0 0.0
        %1182 = vmatpush1.msra.mxu0 0.0
        %1183 = vmatprep.subr.mxu0 0.0
        %1184 = vmatpush1.msra.mxu0 0.0
        %1185 = vmatprep.subr.mxu0 0.0
        %1186 = vmatpush1.msra.mxu0 0.0
        %1187 = vmatprep.subr.mxu0 0.0
        %1188 = vmatpush1.msra.mxu0 0.0
        %1189 = vmatprep.subr.mxu0 0.0
        %1190 = vmatpush1.msra.mxu0 0.0
        %1191 = vmatprep.subr.mxu0 0.0
        %1192 = vmatpush1.msra.mxu0 0.0
        %1193 = vmatprep.subr.mxu0 0.0
        %1194 = vmatpush1.msra.mxu0 0.0
        %1195 = vmatprep.subr.mxu0 0.0
        %1196 = vmatpush1.msra.mxu0 0.0
        %1197 = vmatprep.subr.mxu0 0.0
        %1198 = vmatpush1.msra.mxu0 0.0
        %1199 = vmatprep.subr.mxu0 0.0
        %1200 = vmatpush1.msra.mxu0 0.0
        %1201 = vmatprep.subr.mxu0 0.0
        %1202 = vmatpush1.msra.mxu0 0.0
        %1203 = vmatprep.mubr.f32.mxu0 0.0
        %1204 = vmatmul.mubr.f32.gmra.mrb[0].mxu0 %v683
        %v1205 = vpop.f32.mrb[0].mxu0
        %v1206 = vadd.f32 0.0, %v1205
        %v1207 = vpop.f32.mrb[0].mxu0
        %v1208 = vadd.f32 0.0, %v1207
        %1209 = vmatprep.mubr.f32.mxu0 0.0
        %1210 = vmatmul.mubr.f32.gmra.mrb[0].mxu0 %v686
        %v1211 = vpop.f32.mrb[0].mxu0
        %v1212 = vadd.f32 0.0, %v1211
        %v1213 = vpop.f32.mrb[0].mxu0
        %v1214 = vadd.f32 0.0, %v1213
        %1215 = vmatprep.mubr.f32.mxu0 0.0
        %1216 = vmatmul.mubr.f32.gmra.mrb[0].mxu0 %v689
        %v1217 = vpop.f32.mrb[0].mxu0
        %v1218 = vadd.f32 0.0, %v1217
        %v1219 = vpop.f32.mrb[0].mxu0
        %v1220 = vadd.f32 0.0, %v1219
        %1221 = vmatprep.mubr.f32.mxu0 0.0
        %1222 = vmatmul.mubr.f32.gmra.mrb[0].mxu0 %v692
        %v1223 = vpop.f32.mrb[0].mxu0
        %v1224 = vadd.f32 0.0, %v1223
        %v1225 = vpop.f32.mrb[0].mxu0
        %v1226 = vadd.f32 0.0, %v1225
        %1227 = vdwg.mxu0
        %1228 = vmatprep.subr.mxu0 %v663
        %1229 = vmatpush1.msra.mxu0 %v662
        %1230 = vmatprep.subr.mxu0 %v679
        %1231 = vmatpush1.msra.mxu0 %v678
        %1232 = vmatprep.subr.mxu0 0.0
        %1233 = vmatpush1.msra.mxu0 0.0
        %1234 = vmatprep.subr.mxu0 0.0
        %1235 = vmatpush1.msra.mxu0 0.0
        %1236 = vmatprep.subr.mxu0 0.0
        %1237 = vmatpush1.msra.mxu0 0.0
        %1238 = vmatprep.subr.mxu0 0.0
        %1239 = vmatpush1.msra.mxu0 0.0
        %1240 = vmatprep.subr.mxu0 0.0
        %1241 = vmatpush1.msra.mxu0 0.0
        %1242 = vmatprep.subr.mxu0 0.0
        %1243 = vmatpush1.msra.mxu0 0.0
        %1244 = vmatprep.subr.mxu0 0.0
        %1245 = vmatpush1.msra.mxu0 0.0
        %1246 = vmatprep.subr.mxu0 0.0
        %1247 = vmatpush1.msra.mxu0 0.0
        %1248 = vmatprep.subr.mxu0 0.0
        %1249 = vmatpush1.msra.mxu0 0.0
        %1250 = vmatprep.subr.mxu0 0.0
        %1251 = vmatpush1.msra.mxu0 0.0
        %1252 = vmatprep.subr.mxu0 0.0
        %1253 = vmatpush1.msra.mxu0 0.0
        %1254 = vmatprep.subr.mxu0 0.0
        %1255 = vmatpush1.msra.mxu0 0.0
        %1256 = vmatprep.subr.mxu0 0.0
        %1257 = vmatpush1.msra.mxu0 0.0
        %1258 = vmatprep.subr.mxu0 0.0
        %1259 = vmatpush1.msra.mxu0 0.0
        %1260 = vmatprep.subr.mxu0 0.0
        %1261 = vmatpush1.msra.mxu0 0.0
        %1262 = vmatprep.subr.mxu0 0.0
        %1263 = vmatpush1.msra.mxu0 0.0
        %1264 = vmatprep.subr.mxu0 0.0
        %1265 = vmatpush1.msra.mxu0 0.0
        %1266 = vmatprep.subr.mxu0 0.0
        %1267 = vmatpush1.msra.mxu0 0.0
        %1268 = vmatprep.subr.mxu0 0.0
        %1269 = vmatpush1.msra.mxu0 0.0
        %1270 = vmatprep.subr.mxu0 0.0
        %1271 = vmatpush1.msra.mxu0 0.0
        %1272 = vmatprep.subr.mxu0 0.0
        %1273 = vmatpush1.msra.mxu0 0.0
        %1274 = vmatprep.subr.mxu0 0.0
        %1275 = vmatpush1.msra.mxu0 0.0
        %1276 = vmatprep.subr.mxu0 0.0
        %1277 = vmatpush1.msra.mxu0 0.0
        %1278 = vmatprep.subr.mxu0 0.0
        %1279 = vmatpush1.msra.mxu0 0.0
        %1280 = vmatprep.subr.mxu0 0.0
        %1281 = vmatpush1.msra.mxu0 0.0
        %1282 = vmatprep.subr.mxu0 0.0
        %1283 = vmatpush1.msra.mxu0 0.0
        %1284 = vmatprep.subr.mxu0 0.0
        %1285 = vmatpush1.msra.mxu0 0.0
        %1286 = vmatprep.subr.mxu0 0.0
        %1287 = vmatpush1.msra.mxu0 0.0
        %1288 = vmatprep.subr.mxu0 0.0
        %1289 = vmatpush1.msra.mxu0 0.0
        %1290 = vmatprep.subr.mxu0 0.0
        %1291 = vmatpush1.msra.mxu0 0.0
        %1292 = vmatprep.mubr.f32.mxu0 0.0
        %1293 = vmatmul.mubr.f32.gmra.mrb[0].mxu0 %v683
        %v1294 = vpop.f32.mrb[0].mxu0
        %v1295 = vadd.f32 0.0, %v1294
        %v1296 = vpop.f32.mrb[0].mxu0
        %v1297 = vadd.f32 0.0, %v1296
        %1298 = vmatprep.mubr.f32.mxu0 0.0
        %1299 = vmatmul.mubr.f32.gmra.mrb[0].mxu0 %v686
        %v1300 = vpop.f32.mrb[0].mxu0
        %v1301 = vadd.f32 0.0, %v1300
        %v1302 = vpop.f32.mrb[0].mxu0
        %v1303 = vadd.f32 0.0, %v1302
        %1304 = vmatprep.mubr.f32.mxu0 0.0
        %1305 = vmatmul.mubr.f32.gmra.mrb[0].mxu0 %v689
        %v1306 = vpop.f32.mrb[0].mxu0
        %v1307 = vadd.f32 0.0, %v1306
        %v1308 = vpop.f32.mrb[0].mxu0
        %v1309 = vadd.f32 0.0, %v1308
        %1310 = vmatprep.mubr.f32.mxu0 0.0
        %1311 = vmatmul.mubr.f32.gmra.mrb[0].mxu0 %v692
        %v1312 = vpop.f32.mrb[0].mxu0
        %v1313 = vadd.f32 0.0, %v1312
        %v1314 = vpop.f32.mrb[0].mxu0
        %v1315 = vadd.f32 0.0, %v1314
        %1316 = vdwg.mxu0
        %1317 = vmatprep.subr.mxu0 %v665
        %1318 = vmatpush1.msra.mxu0 %v664
        %1319 = vmatprep.subr.mxu0 %v681
        %1320 = vmatpush1.msra.mxu0 %v680
        %1321 = vmatprep.subr.mxu0 0.0
        %1322 = vmatpush1.msra.mxu0 0.0
        %1323 = vmatprep.subr.mxu0 0.0
        %1324 = vmatpush1.msra.mxu0 0.0
        %1325 = vmatprep.subr.mxu0 0.0
        %1326 = vmatpush1.msra.mxu0 0.0
        %1327 = vmatprep.subr.mxu0 0.0
        %1328 = vmatpush1.msra.mxu0 0.0
        %1329 = vmatprep.subr.mxu0 0.0
        %1330 = vmatpush1.msra.mxu0 0.0
        %1331 = vmatprep.subr.mxu0 0.0
        %1332 = vmatpush1.msra.mxu0 0.0
        %1333 = vmatprep.subr.mxu0 0.0
        %1334 = vmatpush1.msra.mxu0 0.0
        %1335 = vmatprep.subr.mxu0 0.0
        %1336 = vmatpush1.msra.mxu0 0.0
        %1337 = vmatprep.subr.mxu0 0.0
        %1338 = vmatpush1.msra.mxu0 0.0
        %1339 = vmatprep.subr.mxu0 0.0
        %1340 = vmatpush1.msra.mxu0 0.0
        %1341 = vmatprep.subr.mxu0 0.0
        %1342 = vmatpush1.msra.mxu0 0.0
        %1343 = vmatprep.subr.mxu0 0.0
        %1344 = vmatpush1.msra.mxu0 0.0
        %1345 = vmatprep.subr.mxu0 0.0
        %1346 = vmatpush1.msra.mxu0 0.0
        %1347 = vmatprep.subr.mxu0 0.0
        %1348 = vmatpush1.msra.mxu0 0.0
        %1349 = vmatprep.subr.mxu0 0.0
        %1350 = vmatpush1.msra.mxu0 0.0
        %1351 = vmatprep.subr.mxu0 0.0
        %1352 = vmatpush1.msra.mxu0 0.0
        %1353 = vmatprep.subr.mxu0 0.0
        %1354 = vmatpush1.msra.mxu0 0.0
        %1355 = vmatprep.subr.mxu0 0.0
        %1356 = vmatpush1.msra.mxu0 0.0
        %1357 = vmatprep.subr.mxu0 0.0
        %1358 = vmatpush1.msra.mxu0 0.0
        %1359 = vmatprep.subr.mxu0 0.0
        %1360 = vmatpush1.msra.mxu0 0.0
        %1361 = vmatprep.subr.mxu0 0.0
        %1362 = vmatpush1.msra.mxu0 0.0
        %1363 = vmatprep.subr.mxu0 0.0
        %1364 = vmatpush1.msra.mxu0 0.0
        %1365 = vmatprep.subr.mxu0 0.0
        %1366 = vmatpush1.msra.mxu0 0.0
        %1367 = vmatprep.subr.mxu0 0.0
        %1368 = vmatpush1.msra.mxu0 0.0
        %1369 = vmatprep.subr.mxu0 0.0
        %1370 = vmatpush1.msra.mxu0 0.0
        %1371 = vmatprep.subr.mxu0 0.0
        %1372 = vmatpush1.msra.mxu0 0.0
        %1373 = vmatprep.subr.mxu0 0.0
        %1374 = vmatpush1.msra.mxu0 0.0
        %1375 = vmatprep.subr.mxu0 0.0
        %1376 = vmatpush1.msra.mxu0 0.0
        %1377 = vmatprep.subr.mxu0 0.0
        %1378 = vmatpush1.msra.mxu0 0.0
        %1379 = vmatprep.subr.mxu0 0.0
        %1380 = vmatpush1.msra.mxu0 0.0
        %1381 = vmatprep.mubr.f32.mxu0 0.0
        %1382 = vmatmul.mubr.f32.gmra.mrb[0].mxu0 %v683
        %v1383 = vpop.f32.mrb[0].mxu0
        %v1384 = vadd.f32 0.0, %v1383
        %v1385 = vpop.f32.mrb[0].mxu0
        %v1386 = vadd.f32 0.0, %v1385
        %1387 = vmatprep.mubr.f32.mxu0 0.0
        %1388 = vmatmul.mubr.f32.gmra.mrb[0].mxu0 %v686
        %v1389 = vpop.f32.mrb[0].mxu0
        %v1390 = vadd.f32 0.0, %v1389
        %v1391 = vpop.f32.mrb[0].mxu0
        %v1392 = vadd.f32 0.0, %v1391
        %1393 = vmatprep.mubr.f32.mxu0 0.0
        %1394 = vmatmul.mubr.f32.gmra.mrb[0].mxu0 %v689
        %v1395 = vpop.f32.mrb[0].mxu0
        %v1396 = vadd.f32 0.0, %v1395
        %v1397 = vpop.f32.mrb[0].mxu0
        %v1398 = vadd.f32 0.0, %v1397
        %1399 = vmatprep.mubr.f32.mxu0 0.0
        %1400 = vmatmul.mubr.f32.gmra.mrb[0].mxu0 %v692
        %v1401 = vpop.f32.mrb[0].mxu0
        %v1402 = vadd.f32 0.0, %v1401
        %v1403 = vpop.f32.mrb[0].mxu0
        %v1404 = vadd.f32 0.0, %v1403
        %1405 = vdwg.mxu0
        %v1406 = vsub.f32 %v761, %v1129
        %v1407 = vsub.f32 %v763, %v1131
        %v1408 = vsub.f32 %v850, %v1218
        %v1409 = vsub.f32 %v852, %v1220
        %v1410 = vsub.f32 %v939, %v1307
        %v1411 = vsub.f32 %v941, %v1309
        %v1412 = vsub.f32 %v1028, %v1396
        %v1413 = vsub.f32 %v1030, %v1398
        %v1414 = vsub.f32 %v767, %v1135
        %v1415 = vsub.f32 %v769, %v1137
        %v1416 = vsub.f32 %v856, %v1224
        %v1417 = vsub.f32 %v858, %v1226
        %v1418 = vsub.f32 %v945, %v1313
        %v1419 = vsub.f32 %v947, %v1315
        %v1420 = vsub.f32 %v1034, %v1402
        %v1421 = vsub.f32 %v1036, %v1404
        %v1422 = vadd.f32 %v773, %v1117
        %v1423 = vadd.f32 %v775, %v1119
        %v1424 = vadd.f32 %v862, %v1206
        %v1425 = vadd.f32 %v864, %v1208
        %v1426 = vadd.f32 %v951, %v1295
        %v1427 = vadd.f32 %v953, %v1297
        %v1428 = vadd.f32 %v1040, %v1384
        %v1429 = vadd.f32 %v1042, %v1386
        %v1430 = vadd.f32 %v779, %v1123
        %v1431 = vadd.f32 %v781, %v1125
        %v1432 = vadd.f32 %v868, %v1212
        %v1433 = vadd.f32 %v870, %v1214
        %v1434 = vadd.f32 %v957, %v1301
        %v1435 = vadd.f32 %v959, %v1303
        %v1436 = vadd.f32 %v1046, %v1390
        %v1437 = vadd.f32 %v1048, %v1392
        %v1438 = vmul.f32 %v1406, %v1406
        %v1439 = vmul.f32 %v1407, %v1407
        %v1440 = vmul.f32 %v1408, %v1408
        %v1441 = vmul.f32 %v1409, %v1409
        %v1442 = vmul.f32 %v1410, %v1410
        %v1443 = vmul.f32 %v1411, %v1411
        %v1444 = vmul.f32 %v1412, %v1412
        %v1445 = vmul.f32 %v1413, %v1413
        %v1446 = vmul.f32 %v1414, %v1414
        %v1447 = vmul.f32 %v1415, %v1415
        %v1448 = vmul.f32 %v1416, %v1416
        %v1449 = vmul.f32 %v1417, %v1417
        %v1450 = vmul.f32 %v1418, %v1418
        %v1451 = vmul.f32 %v1419, %v1419
        %v1452 = vmul.f32 %v1420, %v1420
        %v1453 = vmul.f32 %v1421, %v1421
        %v1454 = vmul.f32 %v1422, %v1422
        %v1455 = vmul.f32 %v1423, %v1423
        %v1456 = vmul.f32 %v1424, %v1424
        %v1457 = vmul.f32 %v1425, %v1425
        %v1458 = vmul.f32 %v1426, %v1426
        %v1459 = vmul.f32 %v1427, %v1427
        %v1460 = vmul.f32 %v1428, %v1428
        %v1461 = vmul.f32 %v1429, %v1429
        %v1462 = vmul.f32 %v1430, %v1430
        %v1463 = vmul.f32 %v1431, %v1431
        %v1464 = vmul.f32 %v1432, %v1432
        %v1465 = vmul.f32 %v1433, %v1433
        %v1466 = vmul.f32 %v1434, %v1434
        %v1467 = vmul.f32 %v1435, %v1435
        %v1468 = vmul.f32 %v1436, %v1436
        %v1469 = vmul.f32 %v1437, %v1437
        %v1470 = vadd.f32 %v1438, %v1454
        %v1471 = vadd.f32 %v1439, %v1455
        %v1472 = vadd.f32 %v1440, %v1456
        %v1473 = vadd.f32 %v1441, %v1457
        %v1474 = vadd.f32 %v1442, %v1458
        %v1475 = vadd.f32 %v1443, %v1459
        %v1476 = vadd.f32 %v1444, %v1460
        %v1477 = vadd.f32 %v1445, %v1461
        %v1478 = vadd.f32 %v1446, %v1462
        %v1479 = vadd.f32 %v1447, %v1463
        %v1480 = vadd.f32 %v1448, %v1464
        %v1481 = vadd.f32 %v1449, %v1465
        %v1482 = vadd.f32 %v1450, %v1466
        %v1483 = vadd.f32 %v1451, %v1467
        %v1484 = vadd.f32 %v1452, %v1468
        %v1485 = vadd.f32 %v1453, %v1469
        %v1486 = vrsqrt.pop %v1470
        %v1487 = vmul.f32 %v1470, %v1486
        %vm1488 = vcmp.eq.f32.partialorder %v1470, inf
        %v1489 = vsel %vm1488, %v1470, %v1487
        %vm1490 = vcmp.eq.f32.partialorder %v1470, 0.0
        %v1491 = vand.u32 %v1470, 2147483648
        %v1492 = vsel %vm1490, %v1491, %v1489
        %v1493 = vrsqrt.pop %v1471
        %v1494 = vmul.f32 %v1471, %v1493
        %vm1495 = vcmp.eq.f32.partialorder %v1471, inf
        %v1496 = vsel %vm1495, %v1471, %v1494
        %vm1497 = vcmp.eq.f32.partialorder %v1471, 0.0
        %v1498 = vand.u32 %v1471, 2147483648
        %v1499 = vsel %vm1497, %v1498, %v1496
        %v1500 = vrsqrt.pop %v1472
        %v1501 = vmul.f32 %v1472, %v1500
        %vm1502 = vcmp.eq.f32.partialorder %v1472, inf
        %v1503 = vsel %vm1502, %v1472, %v1501
        %vm1504 = vcmp.eq.f32.partialorder %v1472, 0.0
        %v1505 = vand.u32 %v1472, 2147483648
        %v1506 = vsel %vm1504, %v1505, %v1503
        %v1507 = vrsqrt.pop %v1473
        %v1508 = vmul.f32 %v1473, %v1507
        %vm1509 = vcmp.eq.f32.partialorder %v1473, inf
        %v1510 = vsel %vm1509, %v1473, %v1508
        %vm1511 = vcmp.eq.f32.partialorder %v1473, 0.0
        %v1512 = vand.u32 %v1473, 2147483648
        %v1513 = vsel %vm1511, %v1512, %v1510
        %v1514 = vrsqrt.pop %v1474
        %v1515 = vmul.f32 %v1474, %v1514
        %vm1516 = vcmp.eq.f32.partialorder %v1474, inf
        %v1517 = vsel %vm1516, %v1474, %v1515
        %vm1518 = vcmp.eq.f32.partialorder %v1474, 0.0
        %v1519 = vand.u32 %v1474, 2147483648
        %v1520 = vsel %vm1518, %v1519, %v1517
        %v1521 = vrsqrt.pop %v1475
        %v1522 = vmul.f32 %v1475, %v1521
        %vm1523 = vcmp.eq.f32.partialorder %v1475, inf
        %v1524 = vsel %vm1523, %v1475, %v1522
        %vm1525 = vcmp.eq.f32.partialorder %v1475, 0.0
        %v1526 = vand.u32 %v1475, 2147483648
        %v1527 = vsel %vm1525, %v1526, %v1524
        %v1528 = vrsqrt.pop %v1476
        %v1529 = vmul.f32 %v1476, %v1528
        %vm1530 = vcmp.eq.f32.partialorder %v1476, inf
        %v1531 = vsel %vm1530, %v1476, %v1529
        %vm1532 = vcmp.eq.f32.partialorder %v1476, 0.0
        %v1533 = vand.u32 %v1476, 2147483648
        %v1534 = vsel %vm1532, %v1533, %v1531
        %v1535 = vrsqrt.pop %v1477
        %v1536 = vmul.f32 %v1477, %v1535
        %vm1537 = vcmp.eq.f32.partialorder %v1477, inf
        %v1538 = vsel %vm1537, %v1477, %v1536
        %vm1539 = vcmp.eq.f32.partialorder %v1477, 0.0
        %v1540 = vand.u32 %v1477, 2147483648
        %v1541 = vsel %vm1539, %v1540, %v1538
        %v1542 = vrsqrt.pop %v1478
        %v1543 = vmul.f32 %v1478, %v1542
        %vm1544 = vcmp.eq.f32.partialorder %v1478, inf
        %v1545 = vsel %vm1544, %v1478, %v1543
        %vm1546 = vcmp.eq.f32.partialorder %v1478, 0.0
        %v1547 = vand.u32 %v1478, 2147483648
        %v1548 = vsel %vm1546, %v1547, %v1545
        %v1549 = vrsqrt.pop %v1479
        %v1550 = vmul.f32 %v1479, %v1549
        %vm1551 = vcmp.eq.f32.partialorder %v1479, inf
        %v1552 = vsel %vm1551, %v1479, %v1550
        %vm1553 = vcmp.eq.f32.partialorder %v1479, 0.0
        %v1554 = vand.u32 %v1479, 2147483648
        %v1555 = vsel %vm1553, %v1554, %v1552
        %v1556 = vrsqrt.pop %v1480
        %v1557 = vmul.f32 %v1480, %v1556
        %vm1558 = vcmp.eq.f32.partialorder %v1480, inf
        %v1559 = vsel %vm1558, %v1480, %v1557
        %vm1560 = vcmp.eq.f32.partialorder %v1480, 0.0
        %v1561 = vand.u32 %v1480, 2147483648
        %v1562 = vsel %vm1560, %v1561, %v1559
        %v1563 = vrsqrt.pop %v1481
        %v1564 = vmul.f32 %v1481, %v1563
        %vm1565 = vcmp.eq.f32.partialorder %v1481, inf
        %v1566 = vsel %vm1565, %v1481, %v1564
        %vm1567 = vcmp.eq.f32.partialorder %v1481, 0.0
        %v1568 = vand.u32 %v1481, 2147483648
        %v1569 = vsel %vm1567, %v1568, %v1566
        %v1570 = vrsqrt.pop %v1482
        %v1571 = vmul.f32 %v1482, %v1570
        %vm1572 = vcmp.eq.f32.partialorder %v1482, inf
        %v1573 = vsel %vm1572, %v1482, %v1571
        %vm1574 = vcmp.eq.f32.partialorder %v1482, 0.0
        %v1575 = vand.u32 %v1482, 2147483648
        %v1576 = vsel %vm1574, %v1575, %v1573
        %v1577 = vrsqrt.pop %v1483
        %v1578 = vmul.f32 %v1483, %v1577
        %vm1579 = vcmp.eq.f32.partialorder %v1483, inf
        %v1580 = vsel %vm1579, %v1483, %v1578
        %vm1581 = vcmp.eq.f32.partialorder %v1483, 0.0
        %v1582 = vand.u32 %v1483, 2147483648
        %v1583 = vsel %vm1581, %v1582, %v1580
        %v1584 = vrsqrt.pop %v1484
        %v1585 = vmul.f32 %v1484, %v1584
        %vm1586 = vcmp.eq.f32.partialorder %v1484, inf
        %v1587 = vsel %vm1586, %v1484, %v1585
        %vm1588 = vcmp.eq.f32.partialorder %v1484, 0.0
        %v1589 = vand.u32 %v1484, 2147483648
        %v1590 = vsel %vm1588, %v1589, %v1587
        %v1591 = vrsqrt.pop %v1485
        %v1592 = vmul.f32 %v1485, %v1591
        %vm1593 = vcmp.eq.f32.partialorder %v1485, inf
        %v1594 = vsel %vm1593, %v1485, %v1592
        %vm1595 = vcmp.eq.f32.partialorder %v1485, 0.0
        %v1596 = vand.u32 %v1485, 2147483648
        %v1597 = vsel %vm1595, %v1596, %v1594
        %v1598 = vld [vmem:[#allocation3] sm:$0xff]
        %v1599 = vld [vmem:[#allocation3 + $0x8] sm:$0xff]
        %v1600 = vld [vmem:[#allocation3 + $0x10] sm:$0xff]
        %v1601 = vld [vmem:[#allocation3 + $0x18] sm:$0xff]
        %v1602 = vld [vmem:[#allocation3 + $0x20] sm:$0xff]
        %v1603 = vld [vmem:[#allocation3 + $0x28] sm:$0xff]
        %v1604 = vld [vmem:[#allocation3 + $0x30] sm:$0xff]
        %v1605 = vld [vmem:[#allocation3 + $0x38] sm:$0xff]
        %v1606 = vsub.f32 %v1492, %v1520
        %v1607 = vsub.f32 %v1499, %v1527
        %v1608 = vsub.f32 %v1506, %v1534
        %v1609 = vsub.f32 %v1513, %v1541
        %v1610 = vsub.f32 %v1548, %v1576
        %v1611 = vsub.f32 %v1555, %v1583
        %v1612 = vsub.f32 %v1562, %v1590
        %v1613 = vsub.f32 %v1569, %v1597
        %v1614 = vand.u32 2147483647, %v1606
        %v1615 = vand.u32 2147483647, %v1607
        %v1616 = vand.u32 2147483647, %v1608
        %v1617 = vand.u32 2147483647, %v1609
        %v1618 = vand.u32 2147483647, %v1610
        %v1619 = vand.u32 2147483647, %v1611
        %v1620 = vand.u32 2147483647, %v1612
        %v1621 = vand.u32 2147483647, %v1613
        %v1622 = vadd.f32 %v1598, %v1614
        %v1623 = vadd.f32 %v1599, %v1615
        %v1624 = vadd.f32 %v1600, %v1616
        %v1625 = vadd.f32 %v1601, %v1617
        %v1626 = vadd.f32 %v1602, %v1618
        %v1627 = vadd.f32 %v1603, %v1619
        %v1628 = vadd.f32 %v1604, %v1620
        %v1629 = vadd.f32 %v1605, %v1621
        %1630 = vst [vmem:[#allocation3] sm:$0xff] %v1622
        %1631 = vst [vmem:[#allocation3 + $0x8] sm:$0xff] %v1623
        %1632 = vst [vmem:[#allocation3 + $0x10] sm:$0xff] %v1624
        %1633 = vst [vmem:[#allocation3 + $0x18] sm:$0xff] %v1625
        %1634 = vst [vmem:[#allocation3 + $0x20] sm:$0xff] %v1626
        %1635 = vst [vmem:[#allocation3 + $0x28] sm:$0xff] %v1627
        %1636 = vst [vmem:[#allocation3 + $0x30] sm:$0xff] %v1628
        %1637 = vst [vmem:[#allocation3 + $0x38] sm:$0xff] %v1629
        // Predicated region
        $region57: #{_amp_loss_impl.1} parent=35 // pred_check
          %p1638 = pneg %p307
        $region58: #{_amp_loss_impl.1} parent=35 // pred_check_branch
          %1640 = sbr.rel (%p1638) target = $region60
        $region59: #{_amp_loss_impl.1} parent=35 // pred_region
          %v1641 = vld [vmem:[#allocation3] sm:$0xff]
          %v1642 = vld [vmem:[#allocation3 + $0x8] sm:$0xff]
          %v1643 = vld [vmem:[#allocation3 + $0x10] sm:$0xff]
          %v1644 = vld [vmem:[#allocation3 + $0x18] sm:$0xff]
          %v1645 = vld [vmem:[#allocation3 + $0x20] sm:$0xff]
          %v1646 = vld [vmem:[#allocation3 + $0x28] sm:$0xff]
          %v1647 = vld [vmem:[#allocation3 + $0x30] sm:$0xff]
          %v1648 = vld [vmem:[#allocation3 + $0x38] sm:$0xff]
          %v1649 = vadd.f32 %v1641, %v1642
          %v1650 = vadd.f32 %v1649, %v1643
          %v1651 = vadd.f32 %v1650, %v1644
          %v1652 = vadd.f32 %v1651, %v1645
          %v1653 = vadd.f32 %v1652, %v1646
          %v1654 = vadd.f32 %v1653, %v1647
          %v1655 = vadd.f32 %v1654, %v1648
          %1656 = vadd.xlane.f32.xlu0 %v1655
          %v1657 = vpop.xlane.xlu0 %1656
          %v1658 = vrot.slane %v1657, 4
          %v1659 = vadd.f32 %v1657, %v1658
          %v1660 = vrot.slane %v1659, 2
          %v1661 = vadd.f32 %v1659, %v1660
          %v1662 = vrot.slane %v1661, 1
          %v1663 = vadd.f32 %v1661, %v1662
          %s1664 = vtos %v1663
          %v1665 = vstv %s1664
          %1666 = vst [vmem:[%s306] sm:$0xff] %v1665
        $region60: #{_amp_loss_impl.1} parent=35 // pred_fallthru
          _
        %p1667 = scmp.lt.s32.totalorder %s26, 1
        %s1668 = scalar_select %p1667, %s26, 1
        %s1669 = smul.addr %s1668, 8
        %s1670 = scalar_lea.vmem %s4, %s1669
        // Predicated region
        $region61: #{_amp_loss_impl.1} parent=35 // pred_check
          %p1671 = pneg %p150
        $region62: #{_amp_loss_impl.1} parent=35 // pred_check_branch
          %1673 = sbr.rel (%p1671) target = $region64
        $region63: #{_amp_loss_impl.1} parent=35 // pred_region
          _
        $region64: #{_amp_loss_impl.1} parent=35 // pred_fallthru
          _
      $region36: #{_amp_loss_impl.1} parent=5 // pred_fallthru
        _
      %p1674 = scmp.le.s32.totalorder 2, %s17
      // Predicated region
      $region65: #{_amp_loss_impl.1} parent=5 // pred_check
        %p1675 = pneg %p1674
      $region66: #{_amp_loss_impl.1} parent=5 // pred_check_branch
        %1677 = sbr.rel (%p1675) target = $region68
      $region67: #{_amp_loss_impl.1} parent=5 // pred_region
        %s1678 = ssub.s32 %s17, 2
        // Predicated region
        $region69: #{_amp_loss_impl.1} parent=67 // pred_check
          %p1679 = pneg %p156
        $region70: #{_amp_loss_impl.1} parent=67 // pred_check_branch
          %1681 = sbr.rel (%p1679) target = $region72
        $region71: #{_amp_loss_impl.1} parent=67 // pred_region
          %p1682 = scmp.lt.s32.totalorder %s28, 1
          %s1683 = scalar_select %p1682, %s28, 1
          %s1684 = smul.addr %s1683, 8
          %s1685 = scalar_lea.vmem %s4, %s1684
        $region72: #{_amp_loss_impl.1} parent=67 // pred_fallthru
          _
      $region68: #{_amp_loss_impl.1} parent=5 // pred_fallthru
        _
    $region6: #{_amp_loss_impl.1} parent=1 // loop_footer
      %s21 = sadd.s32 1, %s17
    $region7: #{_amp_loss_impl.1} parent=1 // loop_footer_branch
      %16 = sbr.rel target = $region3
    $region8: #{_amp_loss_impl.1} parent=1 // loop_exit
      _
    %1686 = vsyncpa [#allocation5], 1
    %s1687 = scalar_lea.sflag [#allocation5], 1
    %1688 = vsyncpa %s1687, 1
    %1689 = vsyncpa [#allocation7], 1
    %s1690 = scalar_lea.sflag [#allocation7], 1
    %1691 = vsyncpa %s1690, 1
    %1692 = vsyncpa [#allocation10], 1

</llo_original>
